<compile_context>
chip_gen: v7x
topology: tpu7x:2x2x1
jax: 0.10.0
libtpu: 0.0.40
codegen_flags: <defaults>
</compile_context>

<pallas_src>
import math

import jax
import jax.numpy as jnp
from jax.experimental import pallas as pl
from jax.experimental.pallas import tpu as pltpu


# --------------------------------------------------------------------------------------
# Fused kernel: leaf gating + TreeAttn + context + Score + ops logits
# --------------------------------------------------------------------------------------
def prediction_kernel(c_ref, l_ref, hasl_ref, enc_ref, smask_ref, emb_ref, nmask_ref,
                      wcl_ref, bcl_ref, wrl_ref, wrc_ref, bcr_ref,
                      wh_ref, we_ref, ab_ref, v_ref, sb_ref,
                      wsn_ref, wsc_ref, wse_ref, bs_ref, vs_ref,
                      won_ref, woc_ref, bop_ref,
                      score_ref, op_ref, node_ref, ctx_ref):
    f32 = jnp.float32
    H = c_ref.shape[-1]

    c = c_ref[...]                 # (tb, H)   current node embedding (or padding_hidden)
    left = l_ref[...]              # (tb, H)   left-child embedding (ignored where absent)
    has_l = hasl_ref[...]          # (tb, 1)   1.0 if a left child exists

    # --- gate, both branches as fused (H, 2H) matmuls: [concat_l|concat_lg], [concat_r|concat_rg]
    u_l = jnp.dot(c, wcl_ref[...], preferred_element_type=f32) + bcl_ref[...]          # (tb, 2H)
    node_l = jnp.tanh(u_l[:, :H]) * jax.nn.sigmoid(u_l[:, H:])

    u_r = (jnp.dot(left, wrl_ref[...], preferred_element_type=f32)
           + jnp.dot(c, wrc_ref[...], preferred_element_type=f32)
           + bcr_ref[...])                                                              # (tb, 2H)
    node_r = jnp.tanh(u_r[:, :H]) * jax.nn.sigmoid(u_r[:, H:])

    node = jnp.where(has_l > 0.5, node_r, node_l)                                       # (tb, H)
    node_ref[...] = node

    # --- TreeAttn (additive attention) + context, enc kept in native (S, tb, H) layout
    enc = enc_ref[...]                                                                  # (S, tb, H)
    # hidden-side projection with the attn bias folded in once
    hb = jnp.dot(node, wh_ref[...], preferred_element_type=f32) + ab_ref[...]           # (tb, H)
    # encoder-side projection: single contraction over H (== one (S*tb,H)x(H,H) MXU matmul)
    e_proj = jnp.einsum('sbh,hk->sbk', enc, we_ref[...], preferred_element_type=f32)    # (S, tb, H)
    z = jnp.tanh(e_proj + hb[None, :, :])                                               # (S, tb, H)

    # score Linear(H -> 1) with bias; keepdims so the weights broadcast straight over enc lanes
    energies = jnp.sum(z * v_ref[...][None, :, :], axis=-1, keepdims=True) + sb_ref[...]  # (S, tb, 1)
    energies = jnp.where(smask_ref[...] != 0, f32(-1e12), energies)

    # softmax over the sequence axis (axis 0)
    m = jnp.max(energies, axis=0, keepdims=True)
    p = jnp.exp(energies - m)
    w = p / jnp.sum(p, axis=0, keepdims=True)                                            # (S, tb, 1)

    # context = attn_weights @ encoder_outputs, fused (attn weights never written to HBM)
    ctx = jnp.sum(w * enc, axis=0)                                                       # (tb, H)
    ctx_ref[...] = ctx

    # --- Score.attn = Linear(3H -> H) on [node | ctx | emb], split per-operand, bias folded once
    emb = emb_ref[...]                                                                   # (tb, N, H)
    hb2 = (jnp.dot(node, wsn_ref[...], preferred_element_type=f32)
           + jnp.dot(ctx, wsc_ref[...], preferred_element_type=f32)
           + bs_ref[...])                                                                # (tb, H)
    e2 = jnp.einsum('bnh,hk->bnk', emb, wse_ref[...], preferred_element_type=f32)        # (tb, N, H)
    z2 = jnp.tanh(e2 + hb2[:, None, :])
    s = jnp.sum(z2 * vs_ref[...][None, :, :], axis=-1)                                   # (tb, N)
    score_ref[...] = jnp.where(nmask_ref[...] != 0, f32(-1e12), s)

    # --- ops = Linear(2H -> op_nums) on [node | ctx]
    op_ref[...] = (jnp.dot(node, won_ref[...], preferred_element_type=f32)
                   + jnp.dot(ctx, woc_ref[...], preferred_element_type=f32)
                   + bop_ref[...])                                                       # (tb, P)


# --------------------------------------------------------------------------------------
# Wrapper
# --------------------------------------------------------------------------------------
def prediction_forward(c_emb, left_emb, has_left, encoder_outputs, num_pades,
                       seq_mask, mask_nums, p):
    """c_emb/left_emb: (B,H); has_left: (B,1); encoder_outputs: (S,B,H) (PyTorch layout);
    num_pades: (B,num,H); seq_mask: (B,S) bool; mask_nums: (B,N) bool; p: parameter dict."""
    f32 = jnp.float32
    B, H = c_emb.shape
    S = encoder_outputs.shape[0]
    P = p['ops_b'].shape[0]

    # ---- wrapper-side weight prep (pre-transposed / split; folds into XLA layout for free)
    wcl = jnp.concatenate([p['concat_l_w'].T, p['concat_lg_w'].T], axis=1).astype(f32)          # (H, 2H)
    bcl = jnp.concatenate([p['concat_l_b'], p['concat_lg_b']]).reshape(1, 2 * H).astype(f32)
    wrl = jnp.concatenate([p['concat_r_w'][:, :H].T, p['concat_rg_w'][:, :H].T], axis=1).astype(f32)
    wrc = jnp.concatenate([p['concat_r_w'][:, H:].T, p['concat_rg_w'][:, H:].T], axis=1).astype(f32)
    bcr = jnp.concatenate([p['concat_r_b'], p['concat_rg_b']]).reshape(1, 2 * H).astype(f32)
    wh_t = p['attn_attn_w'][:, :H].T.astype(f32)                                                 # (H, H)
    we_t = p['attn_attn_w'][:, H:].T.astype(f32)                                                 # (H, H)
    ab = p['attn_attn_b'].reshape(1, H).astype(f32)
    v = p['attn_score_w'].reshape(1, H).astype(f32)
    sb = p['attn_score_b'].reshape(1, 1).astype(f32)
    wsn = p['score_attn_w'][:, :H].T.astype(f32)                                                 # (H, H)
    wsc = p['score_attn_w'][:, H:2 * H].T.astype(f32)                                            # (H, H)
    wse = p['score_attn_w'][:, 2 * H:].T.astype(f32)                                             # (H, H)
    bs = p['score_attn_b'].reshape(1, H).astype(f32)
    vs = p['score_score_w'].reshape(1, H).astype(f32)
    won = p['ops_w'][:, :H].T.astype(f32)                                                        # (H, P)
    woc = p['ops_w'][:, H:].T.astype(f32)                                                        # (H, P)
    bop = p['ops_b'].reshape(1, P).astype(f32)

    # embedding_weight.repeat(B,1,1) ++ num_pades (returned output; independent of kernel results)
    emb_w = jnp.broadcast_to(p['embedding_weight'].astype(f32),
                             (B,) + tuple(p['embedding_weight'].shape[1:]))
    emb_w = jnp.concatenate([emb_w, num_pades.astype(f32)], axis=1)                              # (B, N, H)
    N = emb_w.shape[1]

    # batch tile: multiples of 8 sublanes when possible (scales / pipelines / shards across
    # v7x's 2 TensorCores via the "parallel" grid axis); full batch at the toy B=2.
    tb = 8 if B % 8 == 0 else B
    grid = (B // tb,)
    row = lambda b: (b, 0)
    const2 = lambda b: (0, 0)

    # seq mask passed already in the kernel's (S, B, 1) consumption layout (tiny array).
    mask_sb1 = jnp.transpose(seq_mask.astype(jnp.int32))[:, :, None]                             # (S, B, 1)

    num_score, op, node, ctx = pl.pallas_call(
        prediction_kernel,
        out_shape=(jax.ShapeDtypeStruct((B, N), f32),
                   jax.ShapeDtypeStruct((B, P), f32),
                   jax.ShapeDtypeStruct((B, H), f32),
                   jax.ShapeDtypeStruct((B, H), f32)),
        grid=grid,
        in_specs=[
            pl.BlockSpec((tb, H), row),                        # c_emb
            pl.BlockSpec((tb, H), row),                        # left_emb
            pl.BlockSpec((tb, 1), row),                        # has_left
            pl.BlockSpec((S, tb, H), lambda b: (0, b, 0)),     # encoder_outputs (native layout)
            pl.BlockSpec((S, tb, 1), lambda b: (0, b, 0)),     # seq mask
            pl.BlockSpec((tb, N, H), lambda b: (b, 0, 0)),     # embedding weights (const ++ pades)
            pl.BlockSpec((tb, N), row),                        # mask_nums
            pl.BlockSpec((H, 2 * H), const2),                  # wcl
            pl.BlockSpec((1, 2 * H), const2),                  # bcl
            pl.BlockSpec((H, 2 * H), const2),                  # wrl
            pl.BlockSpec((H, 2 * H), const2),                  # wrc
            pl.BlockSpec((1, 2 * H), const2),                  # bcr
            pl.BlockSpec((H, H), const2),                      # wh_t
            pl.BlockSpec((H, H), const2),                      # we_t
            pl.BlockSpec((1, H), const2),                      # attn bias
            pl.BlockSpec((1, H), const2),                      # attn score weight
            pl.BlockSpec((1, 1), const2),                      # attn score bias
            pl.BlockSpec((H, H), const2),                      # wsn
            pl.BlockSpec((H, H), const2),                      # wsc
            pl.BlockSpec((H, H), const2),                      # wse
            pl.BlockSpec((1, H), const2),                      # score attn bias
            pl.BlockSpec((1, H), const2),                      # score score weight (no bias)
            pl.BlockSpec((H, P), const2),                      # ops weight (node half)
            pl.BlockSpec((H, P), const2),                      # ops weight (ctx half)
            pl.BlockSpec((1, P), const2),                      # ops bias
        ],
        out_specs=(pl.BlockSpec((tb, N), row),
                   pl.BlockSpec((tb, P), row),
                   pl.BlockSpec((tb, H), row),
                   pl.BlockSpec((tb, H), row)),
        compiler_params=pltpu.CompilerParams(dimension_semantics=("parallel",)),
    )(c_emb.astype(f32), left_emb.astype(f32), has_left.astype(f32),
      encoder_outputs.astype(f32), mask_sb1, emb_w, mask_nums.astype(jnp.int32),
      wcl, bcl, wrl, wrc, bcr, wh_t, we_t, ab, v, sb,
      wsn, wsc, wse, bs, vs, won, woc, bop)

    return num_score, op, node[:, None, :], ctx[:, None, :], emb_w


# --------------------------------------------------------------------------------------
# Pure-JAX reference mirroring the PyTorch forward (eval mode)
# --------------------------------------------------------------------------------------
def prediction_reference(c_emb, left_emb, has_left, encoder_outputs, num_pades,
                         seq_mask, mask_nums, p):
    B, H = c_emb.shape
    S = encoder_outputs.shape[0]
    # gate
    g_l = jnp.tanh(c_emb @ p['concat_l_w'].T + p['concat_l_b'])
    t_l = jax.nn.sigmoid(c_emb @ p['concat_lg_w'].T + p['concat_lg_b'])
    x = jnp.concatenate([left_emb, c_emb], axis=1)
    g_r = jnp.tanh(x @ p['concat_r_w'].T + p['concat_r_b'])
    t_r = jax.nn.sigmoid(x @ p['concat_rg_w'].T + p['concat_rg_b'])
    node = jnp.where(has_left > 0.5, g_r * t_r, g_l * t_l)                  # (B, H)
    current_node = node[:, None, :]                                          # (B, 1, H)
    # TreeAttn
    hid_rep = jnp.broadcast_to(node[None, :, :], (S, B, H))
    energy_in = jnp.concatenate([hid_rep, encoder_outputs], axis=2).reshape(-1, 2 * H)
    sf = jnp.tanh(energy_in @ p['attn_attn_w'].T + p['attn_attn_b'])
    e = (sf @ p['attn_score_w'].T + p['attn_score_b'])[:, 0].reshape(S, B).T
    e = jnp.where(seq_mask, -1e12, e)
    attn = jax.nn.softmax(e, axis=1)[:, None, :]                             # (B, 1, S)
    context = attn @ jnp.transpose(encoder_outputs, (1, 0, 2))               # (B, 1, H)
    # embedding weight
    emb_w = jnp.broadcast_to(p['embedding_weight'],
                             (B,) + tuple(p['embedding_weight'].shape[1:]))
    emb_w = jnp.concatenate([emb_w, num_pades], axis=1)                      # (B, N, H)
    # Score
    leaf = jnp.concatenate([current_node, context], axis=2)[:, 0, :]         # (B, 2H)
    N = emb_w.shape[1]
    leaf_rep = jnp.broadcast_to(leaf[:, None, :], (B, N, 2 * H))
    e_in = jnp.concatenate([leaf_rep, emb_w], axis=2).reshape(-1, 3 * H)
    zz = jnp.tanh(e_in @ p['score_attn_w'].T + p['score_attn_b'])
    num_score = (zz @ p['score_score_w'].T)[:, 0].reshape(B, N)
    num_score = jnp.where(mask_nums, -1e12, num_score)
    # ops
    op = leaf @ p['ops_w'].T + p['ops_b']
    return num_score, op, current_node, context, emb_w


if __name__ == "__main__":
    H, S, B = 32, 8, 2          # hidden, seq len, batch
    IN_CONST, NUM_P, OPS = 4, 3, 6
    N = IN_CONST + NUM_P

    key = jax.random.PRNGKey(0)
    ks = iter(jax.random.split(key, 40))

    def lin(out_f, in_f, bias=True):
        bound = 1.0 / math.sqrt(in_f)
        w = jax.random.uniform(next(ks), (out_f, in_f), jnp.float32, -bound, bound)
        b = jax.random.uniform(next(ks), (out_f,), jnp.float32, -bound, bound) if bias else None
        return w, b

    p = {}
    p['embedding_weight'] = jax.random.normal(next(ks), (1, IN_CONST, H), jnp.float32)
    p['concat_l_w'], p['concat_l_b'] = lin(H, H)
    p['concat_r_w'], p['concat_r_b'] = lin(H, 2 * H)
    p['concat_lg_w'], p['concat_lg_b'] = lin(H, H)
    p['concat_rg_w'], p['concat_rg_b'] = lin(H, 2 * H)
    p['ops_w'], p['ops_b'] = lin(OPS, 2 * H)
    p['attn_attn_w'], p['attn_attn_b'] = lin(H, 2 * H)
    p['attn_score_w'], p['attn_score_b'] = lin(1, H)
    p['score_attn_w'], p['score_attn_b'] = lin(H, 3 * H)
    p['score_score_w'], _ = lin(1, H, bias=False)

    # host-side preprocessing of node_stacks / left_childs into dense tensors
    c_emb = jax.random.normal(next(ks), (B, H), jnp.float32)       # top-of-stack / padding_hidden
    left_emb = jax.random.normal(next(ks), (B, H), jnp.float32)    # left-child embeddings
    has_left = jnp.array([[0.0], [1.0]], jnp.float32)              # batch 0: no left child; batch 1: has one
    encoder_outputs = jax.random.normal(next(ks), (S, B, H), jnp.float32)
    num_pades = jax.random.normal(next(ks), (B, NUM_P, H), jnp.float32)
    seq_len = jnp.array([S, 5])
    seq_mask = jnp.arange(S)[None, :] >= seq_len[:, None]          # (B, S) bool, True = pad
    num_cnt = jnp.array([N, 5])
    mask_nums = jnp.arange(N)[None, :] >= num_cnt[:, None]         # (B, N) bool, True = masked

    outs = jax.jit(prediction_forward)(c_emb, left_emb, has_left, encoder_outputs,
                                       num_pades, seq_mask, mask_nums, p)
    outs = jax.block_until_ready(outs)

    refs = prediction_reference(c_emb, left_emb, has_left, encoder_outputs,
                                num_pades, seq_mask, mask_nums, p)

    names = ["num_score", "op", "current_node", "current_context", "embedding_weight"]
    for name, o, r in zip(names, outs, refs):
        assert o.shape == r.shape, (name, o.shape, r.shape)
        assert jnp.allclose(o, r, atol=1e-4, rtol=1e-4), name
    print("KERNEL_OK")
</pallas_src>

<mosaic_0001>
module attributes {stable_mosaic.version = 11 : i64} {
  func.func @prediction_kernel(%arg0: i32, %arg1: memref<2x32xf32, #tpu.memory_space<vmem>>, %arg2: memref<2x32xf32, #tpu.memory_space<vmem>>, %arg3: memref<2x1xf32, #tpu.memory_space<vmem>>, %arg4: memref<8x2x32xf32, #tpu.memory_space<vmem>>, %arg5: memref<8x2x1xi32, #tpu.memory_space<vmem>>, %arg6: memref<2x7x32xf32, #tpu.memory_space<vmem>>, %arg7: memref<2x7xi32, #tpu.memory_space<vmem>>, %arg8: memref<32x64xf32, #tpu.memory_space<vmem>>, %arg9: memref<1x64xf32, #tpu.memory_space<vmem>>, %arg10: memref<32x64xf32, #tpu.memory_space<vmem>>, %arg11: memref<32x64xf32, #tpu.memory_space<vmem>>, %arg12: memref<1x64xf32, #tpu.memory_space<vmem>>, %arg13: memref<32x32xf32, #tpu.memory_space<vmem>>, %arg14: memref<32x32xf32, #tpu.memory_space<vmem>>, %arg15: memref<1x32xf32, #tpu.memory_space<vmem>>, %arg16: memref<1x32xf32, #tpu.memory_space<vmem>>, %arg17: memref<1x1xf32, #tpu.memory_space<vmem>>, %arg18: memref<32x32xf32, #tpu.memory_space<vmem>>, %arg19: memref<32x32xf32, #tpu.memory_space<vmem>>, %arg20: memref<32x32xf32, #tpu.memory_space<vmem>>, %arg21: memref<1x32xf32, #tpu.memory_space<vmem>>, %arg22: memref<1x32xf32, #tpu.memory_space<vmem>>, %arg23: memref<32x6xf32, #tpu.memory_space<vmem>>, %arg24: memref<32x6xf32, #tpu.memory_space<vmem>>, %arg25: memref<1x6xf32, #tpu.memory_space<vmem>>, %arg26: memref<2x7xf32, #tpu.memory_space<vmem>>, %arg27: memref<2x6xf32, #tpu.memory_space<vmem>>, %arg28: memref<2x32xf32, #tpu.memory_space<vmem>>, %arg29: memref<2x32xf32, #tpu.memory_space<vmem>>) attributes {dimension_semantics = [#tpu.dimension_semantics<parallel>], iteration_bounds = array<i64: 1>, scalar_prefetch = 0 : i64, scratch_operands = 0 : i64, tpu.core_type = #tpu.core_type<tc>, window_params = [{transform_indices = @transform_0, window_bounds = array<i64: 2, 32>}, {transform_indices = @transform_1, window_bounds = array<i64: 2, 32>}, {transform_indices = @transform_2, window_bounds = array<i64: 2, 1>}, {transform_indices = @transform_3, window_bounds = array<i64: 8, 2, 32>}, {transform_indices = @transform_4, window_bounds = array<i64: 8, 2, 1>}, {transform_indices = @transform_5, window_bounds = array<i64: 2, 7, 32>}, {transform_indices = @transform_6, window_bounds = array<i64: 2, 7>}, {pipeline_mode = #tpu.pipeline_mode<synchronous>, transform_indices = @transform_7, window_bounds = array<i64: 32, 64>}, {pipeline_mode = #tpu.pipeline_mode<synchronous>, transform_indices = @transform_8, window_bounds = array<i64: 1, 64>}, {pipeline_mode = #tpu.pipeline_mode<synchronous>, transform_indices = @transform_9, window_bounds = array<i64: 32, 64>}, {pipeline_mode = #tpu.pipeline_mode<synchronous>, transform_indices = @transform_10, window_bounds = array<i64: 32, 64>}, {pipeline_mode = #tpu.pipeline_mode<synchronous>, transform_indices = @transform_11, window_bounds = array<i64: 1, 64>}, {pipeline_mode = #tpu.pipeline_mode<synchronous>, transform_indices = @transform_12, window_bounds = array<i64: 32, 32>}, {pipeline_mode = #tpu.pipeline_mode<synchronous>, transform_indices = @transform_13, window_bounds = array<i64: 32, 32>}, {pipeline_mode = #tpu.pipeline_mode<synchronous>, transform_indices = @transform_14, window_bounds = array<i64: 1, 32>}, {pipeline_mode = #tpu.pipeline_mode<synchronous>, transform_indices = @transform_15, window_bounds = array<i64: 1, 32>}, {pipeline_mode = #tpu.pipeline_mode<synchronous>, transform_indices = @transform_16, window_bounds = array<i64: 1, 1>}, {pipeline_mode = #tpu.pipeline_mode<synchronous>, transform_indices = @transform_17, window_bounds = array<i64: 32, 32>}, {pipeline_mode = #tpu.pipeline_mode<synchronous>, transform_indices = @transform_18, window_bounds = array<i64: 32, 32>}, {pipeline_mode = #tpu.pipeline_mode<synchronous>, transform_indices = @transform_19, window_bounds = array<i64: 32, 32>}, {pipeline_mode = #tpu.pipeline_mode<synchronous>, transform_indices = @transform_20, window_bounds = array<i64: 1, 32>}, {pipeline_mode = #tpu.pipeline_mode<synchronous>, transform_indices = @transform_21, window_bounds = array<i64: 1, 32>}, {pipeline_mode = #tpu.pipeline_mode<synchronous>, transform_indices = @transform_22, window_bounds = array<i64: 32, 6>}, {pipeline_mode = #tpu.pipeline_mode<synchronous>, transform_indices = @transform_23, window_bounds = array<i64: 32, 6>}, {pipeline_mode = #tpu.pipeline_mode<synchronous>, transform_indices = @transform_24, window_bounds = array<i64: 1, 6>}, {transform_indices = @transform_25, window_bounds = array<i64: 2, 7>}, {transform_indices = @transform_26, window_bounds = array<i64: 2, 6>}, {transform_indices = @transform_27, window_bounds = array<i64: 2, 32>}, {transform_indices = @transform_28, window_bounds = array<i64: 2, 32>}]} {
    %c0 = arith.constant 0 : index
    %c0_0 = arith.constant 0 : index
    %0 = vector.load %arg1[%c0, %c0_0] : memref<2x32xf32, #tpu.memory_space<vmem>>, vector<2x32xf32>
    %c0_1 = arith.constant 0 : index
    %c0_2 = arith.constant 0 : index
    %1 = vector.load %arg2[%c0_1, %c0_2] : memref<2x32xf32, #tpu.memory_space<vmem>>, vector<2x32xf32>
    %c0_3 = arith.constant 0 : index
    %c0_4 = arith.constant 0 : index
    %2 = vector.load %arg3[%c0_3, %c0_4] : memref<2x1xf32, #tpu.memory_space<vmem>>, vector<2x1xf32>
    %c0_5 = arith.constant 0 : index
    %c0_6 = arith.constant 0 : index
    %3 = vector.load %arg8[%c0_5, %c0_6] : memref<32x64xf32, #tpu.memory_space<vmem>>, vector<32x64xf32>
    %cst = arith.constant dense<0.000000e+00> : vector<2x64xf32>
    %4 = tpu.matmul %0, %3, %cst {dimension_numbers = #tpu.dot_dimension_numbers<[1], [0], [0], [1], [0, 0, 1, 1], [], []>} : vector<2x32xf32>, vector<32x64xf32>, vector<2x64xf32> -> vector<2x64xf32>
    %c0_7 = arith.constant 0 : index
    %c0_8 = arith.constant 0 : index
    %5 = vector.load %arg9[%c0_7, %c0_8] : memref<1x64xf32, #tpu.memory_space<vmem>>, vector<1x64xf32>
    %6 = vector.broadcast %5 : vector<1x64xf32> to vector<2x64xf32>
    %7 = arith.addf %4, %6 : vector<2x64xf32>
    %8 = vector.extract_strided_slice %7 {offsets = [0, 0], sizes = [2, 32], strides = [1, 1]} : vector<2x64xf32> to vector<2x32xf32>
    %9 = math.tanh %8 : vector<2x32xf32>
    %10 = vector.extract_strided_slice %7 {offsets = [0, 32], sizes = [2, 32], strides = [1, 1]} : vector<2x64xf32> to vector<2x32xf32>
    %11 = arith.negf %10 : vector<2x32xf32>
    %12 = math.exp %11 : vector<2x32xf32>
    %cst_9 = arith.constant 1.000000e+00 : f32
    %13 = vector.broadcast %cst_9 : f32 to vector<2x32xf32>
    %14 = arith.addf %13, %12 : vector<2x32xf32>
    %15 = arith.divf %13, %14 : vector<2x32xf32>
    %16 = arith.mulf %9, %15 : vector<2x32xf32>
    %c0_10 = arith.constant 0 : index
    %c0_11 = arith.constant 0 : index
    %17 = vector.load %arg10[%c0_10, %c0_11] : memref<32x64xf32, #tpu.memory_space<vmem>>, vector<32x64xf32>
    %cst_12 = arith.constant dense<0.000000e+00> : vector<2x64xf32>
    %18 = tpu.matmul %1, %17, %cst_12 {dimension_numbers = #tpu.dot_dimension_numbers<[1], [0], [0], [1], [0, 0, 1, 1], [], []>} : vector<2x32xf32>, vector<32x64xf32>, vector<2x64xf32> -> vector<2x64xf32>
    %c0_13 = arith.constant 0 : index
    %c0_14 = arith.constant 0 : index
    %19 = vector.load %arg11[%c0_13, %c0_14] : memref<32x64xf32, #tpu.memory_space<vmem>>, vector<32x64xf32>
    %cst_15 = arith.constant dense<0.000000e+00> : vector<2x64xf32>
    %20 = tpu.matmul %0, %19, %cst_15 {dimension_numbers = #tpu.dot_dimension_numbers<[1], [0], [0], [1], [0, 0, 1, 1], [], []>} : vector<2x32xf32>, vector<32x64xf32>, vector<2x64xf32> -> vector<2x64xf32>
    %21 = arith.addf %18, %20 : vector<2x64xf32>
    %c0_16 = arith.constant 0 : index
    %c0_17 = arith.constant 0 : index
    %22 = vector.load %arg12[%c0_16, %c0_17] : memref<1x64xf32, #tpu.memory_space<vmem>>, vector<1x64xf32>
    %23 = vector.broadcast %22 : vector<1x64xf32> to vector<2x64xf32>
    %24 = arith.addf %21, %23 : vector<2x64xf32>
    %25 = vector.extract_strided_slice %24 {offsets = [0, 0], sizes = [2, 32], strides = [1, 1]} : vector<2x64xf32> to vector<2x32xf32>
    %26 = math.tanh %25 : vector<2x32xf32>
    %27 = vector.extract_strided_slice %24 {offsets = [0, 32], sizes = [2, 32], strides = [1, 1]} : vector<2x64xf32> to vector<2x32xf32>
    %28 = arith.negf %27 : vector<2x32xf32>
    %29 = math.exp %28 : vector<2x32xf32>
    %cst_18 = arith.constant 1.000000e+00 : f32
    %30 = vector.broadcast %cst_18 : f32 to vector<2x32xf32>
    %31 = arith.addf %30, %29 : vector<2x32xf32>
    %32 = arith.divf %30, %31 : vector<2x32xf32>
    %33 = arith.mulf %26, %32 : vector<2x32xf32>
    %cst_19 = arith.constant 5.000000e-01 : f32
    %34 = vector.broadcast %cst_19 : f32 to vector<2x1xf32>
    %35 = arith.cmpf ogt, %2, %34 : vector<2x1xf32>
    %36 = vector.shape_cast %35 : vector<2x1xi1> to vector<2x1xi1>
    %37 = vector.broadcast %36 : vector<2x1xi1> to vector<2x32xi1>
    %38 = arith.select %37, %33, %16 : vector<2x32xi1>, vector<2x32xf32>
    %c0_20 = arith.constant 0 : index
    %c0_21 = arith.constant 0 : index
    %39 = vector.load %arg28[%c0_20, %c0_21] : memref<2x32xf32, #tpu.memory_space<vmem>>, vector<2x32xf32>
    tpu.vector_store %arg28[%c0_20, %c0_21], %38 {strides = array<i32>} : memref<2x32xf32, #tpu.memory_space<vmem>>, vector<2x32xf32>,
    %c0_22 = arith.constant 0 : index
    %c0_23 = arith.constant 0 : index
    %c0_24 = arith.constant 0 : index
    %40 = vector.load %arg4[%c0_22, %c0_23, %c0_24] : memref<8x2x32xf32, #tpu.memory_space<vmem>>, vector<8x2x32xf32>
    %c0_25 = arith.constant 0 : index
    %c0_26 = arith.constant 0 : index
    %41 = vector.load %arg13[%c0_25, %c0_26] : memref<32x32xf32, #tpu.memory_space<vmem>>, vector<32x32xf32>
    %cst_27 = arith.constant dense<0.000000e+00> : vector<2x32xf32>
    %42 = tpu.matmul %38, %41, %cst_27 {dimension_numbers = #tpu.dot_dimension_numbers<[1], [0], [0], [1], [0, 0, 1, 1], [], []>} : vector<2x32xf32>, vector<32x32xf32>, vector<2x32xf32> -> vector<2x32xf32>
    %c0_28 = arith.constant 0 : index
    %c0_29 = arith.constant 0 : index
    %43 = vector.load %arg15[%c0_28, %c0_29] : memref<1x32xf32, #tpu.memory_space<vmem>>, vector<1x32xf32>
    %44 = vector.broadcast %43 : vector<1x32xf32> to vector<2x32xf32>
    %45 = arith.addf %42, %44 : vector<2x32xf32>
    %c0_30 = arith.constant 0 : index
    %c0_31 = arith.constant 0 : index
    %46 = vector.load %arg14[%c0_30, %c0_31] : memref<32x32xf32, #tpu.memory_space<vmem>>, vector<32x32xf32>
    "tpu.trace_start"() <{level = 10 : i32, message = "sbh,hk->sbk"}> : () -> ()
    %cst_32 = arith.constant dense<0.000000e+00> : vector<8x2x32xf32>
    %47 = tpu.matmul %40, %46, %cst_32 {dimension_numbers = #tpu.dot_dimension_numbers<[2], [0], [0, 1], [1], [0, 0, 0, 1, 1, 1], [], []>} : vector<8x2x32xf32>, vector<32x32xf32>, vector<8x2x32xf32> -> vector<8x2x32xf32>
    "tpu.trace_stop"() : () -> ()
    %48 = vector.shape_cast %45 : vector<2x32xf32> to vector<1x2x32xf32>
    %49 = vector.broadcast %48 : vector<1x2x32xf32> to vector<8x2x32xf32>
    %50 = arith.addf %47, %49 : vector<8x2x32xf32>
    %51 = math.tanh %50 : vector<8x2x32xf32>
    %c0_33 = arith.constant 0 : index
    %c0_34 = arith.constant 0 : index
    %52 = vector.load %arg16[%c0_33, %c0_34] : memref<1x32xf32, #tpu.memory_space<vmem>>, vector<1x32xf32>
    %53 = vector.shape_cast %52 : vector<1x32xf32> to vector<1x1x32xf32>
    %54 = vector.broadcast %53 : vector<1x1x32xf32> to vector<8x2x32xf32>
    %55 = arith.mulf %51, %54 : vector<8x2x32xf32>
    %cst_35 = arith.constant dense<0.000000e+00> : vector<8x2xf32>
    %56 = vector.multi_reduction <add>, %55, %cst_35 [2] : vector<8x2x32xf32> to vector<8x2xf32>
    %57 = vector.shape_cast %56 : vector<8x2xf32> to vector<8x2x1xf32>
    %c0_36 = arith.constant 0 : index
    %c0_37 = arith.constant 0 : index
    %58 = vector.load %arg17[%c0_36, %c0_37] : memref<1x1xf32, #tpu.memory_space<vmem>>, vector<1x1xf32>
    %59 = vector.shape_cast %58 : vector<1x1xf32> to vector<1x1x1xf32>
    %60 = vector.broadcast %59 : vector<1x1x1xf32> to vector<8x2x1xf32>
    %61 = arith.addf %57, %60 : vector<8x2x1xf32>
    %c0_38 = arith.constant 0 : index
    %c0_39 = arith.constant 0 : index
    %c0_40 = arith.constant 0 : index
    %62 = vector.load %arg5[%c0_38, %c0_39, %c0_40] : memref<8x2x1xi32, #tpu.memory_space<vmem>>, vector<8x2x1xi32>
    %c0_i32 = arith.constant 0 : i32
    %63 = vector.broadcast %c0_i32 : i32 to vector<8x2x1xi32>
    %64 = arith.cmpi ne, %62, %63 : vector<8x2x1xi32>
    %cst_41 = arith.constant -9.99999995E+11 : f32
    %65 = vector.broadcast %cst_41 : f32 to vector<8x2x1xf32>
    %66 = arith.select %64, %65, %61 : vector<8x2x1xi1>, vector<8x2x1xf32>
    %cst_42 = arith.constant dense<0xFF800000> : vector<2x1xf32>
    %67 = vector.multi_reduction <maximumf>, %66, %cst_42 [0] : vector<8x2x1xf32> to vector<2x1xf32>
    %68 = vector.shape_cast %67 : vector<2x1xf32> to vector<1x2x1xf32>
    %69 = vector.broadcast %68 : vector<1x2x1xf32> to vector<8x2x1xf32>
    %70 = arith.subf %66, %69 : vector<8x2x1xf32>
    %71 = math.exp %70 : vector<8x2x1xf32>
    %cst_43 = arith.constant dense<0.000000e+00> : vector<2x1xf32>
    %72 = vector.multi_reduction <add>, %71, %cst_43 [0] : vector<8x2x1xf32> to vector<2x1xf32>
    %73 = vector.shape_cast %72 : vector<2x1xf32> to vector<1x2x1xf32>
    %74 = vector.broadcast %73 : vector<1x2x1xf32> to vector<8x2x1xf32>
    %75 = arith.divf %71, %74 : vector<8x2x1xf32>
    %76 = vector.broadcast %75 : vector<8x2x1xf32> to vector<8x2x32xf32>
    %77 = arith.mulf %76, %40 : vector<8x2x32xf32>
    %cst_44 = arith.constant dense<0.000000e+00> : vector<2x32xf32>
    %78 = vector.multi_reduction <add>, %77, %cst_44 [0] : vector<8x2x32xf32> to vector<2x32xf32>
    %c0_45 = arith.constant 0 : index
    %c0_46 = arith.constant 0 : index
    %79 = vector.load %arg29[%c0_45, %c0_46] : memref<2x32xf32, #tpu.memory_space<vmem>>, vector<2x32xf32>
    tpu.vector_store %arg29[%c0_45, %c0_46], %78 {strides = array<i32>} : memref<2x32xf32, #tpu.memory_space<vmem>>, vector<2x32xf32>,
    %c0_47 = arith.constant 0 : index
    %c0_48 = arith.constant 0 : index
    %c0_49 = arith.constant 0 : index
    %80 = vector.load %arg6[%c0_47, %c0_48, %c0_49] : memref<2x7x32xf32, #tpu.memory_space<vmem>>, vector<2x7x32xf32>
    %c0_50 = arith.constant 0 : index
    %c0_51 = arith.constant 0 : index
    %81 = vector.load %arg18[%c0_50, %c0_51] : memref<32x32xf32, #tpu.memory_space<vmem>>, vector<32x32xf32>
    %cst_52 = arith.constant dense<0.000000e+00> : vector<2x32xf32>
    %82 = tpu.matmul %38, %81, %cst_52 {dimension_numbers = #tpu.dot_dimension_numbers<[1], [0], [0], [1], [0, 0, 1, 1], [], []>} : vector<2x32xf32>, vector<32x32xf32>, vector<2x32xf32> -> vector<2x32xf32>
    %c0_53 = arith.constant 0 : index
    %c0_54 = arith.constant 0 : index
    %83 = vector.load %arg19[%c0_53, %c0_54] : memref<32x32xf32, #tpu.memory_space<vmem>>, vector<32x32xf32>
    %cst_55 = arith.constant dense<0.000000e+00> : vector<2x32xf32>
    %84 = tpu.matmul %78, %83, %cst_55 {dimension_numbers = #tpu.dot_dimension_numbers<[1], [0], [0], [1], [0, 0, 1, 1], [], []>} : vector<2x32xf32>, vector<32x32xf32>, vector<2x32xf32> -> vector<2x32xf32>
    %85 = arith.addf %82, %84 : vector<2x32xf32>
    %c0_56 = arith.constant 0 : index
    %c0_57 = arith.constant 0 : index
    %86 = vector.load %arg21[%c0_56, %c0_57] : memref<1x32xf32, #tpu.memory_space<vmem>>, vector<1x32xf32>
    %87 = vector.broadcast %86 : vector<1x32xf32> to vector<2x32xf32>
    %88 = arith.addf %85, %87 : vector<2x32xf32>
    %c0_58 = arith.constant 0 : index
    %c0_59 = arith.constant 0 : index
    %89 = vector.load %arg20[%c0_58, %c0_59] : memref<32x32xf32, #tpu.memory_space<vmem>>, vector<32x32xf32>
    "tpu.trace_start"() <{level = 10 : i32, message = "bnh,hk->bnk"}> : () -> ()
    %cst_60 = arith.constant dense<0.000000e+00> : vector<2x7x32xf32>
    %90 = tpu.matmul %80, %89, %cst_60 {dimension_numbers = #tpu.dot_dimension_numbers<[2], [0], [0, 1], [1], [0, 0, 0, 1, 1, 1], [], []>} : vector<2x7x32xf32>, vector<32x32xf32>, vector<2x7x32xf32> -> vector<2x7x32xf32>
    "tpu.trace_stop"() : () -> ()
    %91 = vector.shape_cast %88 : vector<2x32xf32> to vector<2x1x32xf32>
    %92 = vector.broadcast %91 : vector<2x1x32xf32> to vector<2x7x32xf32>
    %93 = arith.addf %90, %92 : vector<2x7x32xf32>
    %94 = math.tanh %93 : vector<2x7x32xf32>
    %c0_61 = arith.constant 0 : index
    %c0_62 = arith.constant 0 : index
    %95 = vector.load %arg22[%c0_61, %c0_62] : memref<1x32xf32, #tpu.memory_space<vmem>>, vector<1x32xf32>
    %96 = vector.shape_cast %95 : vector<1x32xf32> to vector<1x1x32xf32>
    %97 = vector.broadcast %96 : vector<1x1x32xf32> to vector<2x7x32xf32>
    %98 = arith.mulf %94, %97 : vector<2x7x32xf32>
    %cst_63 = arith.constant dense<0.000000e+00> : vector<2x7xf32>
    %99 = vector.multi_reduction <add>, %98, %cst_63 [2] : vector<2x7x32xf32> to vector<2x7xf32>
    %c0_64 = arith.constant 0 : index
    %c0_65 = arith.constant 0 : index
    %100 = vector.load %arg7[%c0_64, %c0_65] : memref<2x7xi32, #tpu.memory_space<vmem>>, vector<2x7xi32>
    %c0_i32_66 = arith.constant 0 : i32
    %101 = vector.broadcast %c0_i32_66 : i32 to vector<2x7xi32>
    %102 = arith.cmpi ne, %100, %101 : vector<2x7xi32>
    %cst_67 = arith.constant -9.99999995E+11 : f32
    %103 = vector.broadcast %cst_67 : f32 to vector<2x7xf32>
    %104 = arith.select %102, %103, %99 : vector<2x7xi1>, vector<2x7xf32>
    %c0_68 = arith.constant 0 : index
    %c0_69 = arith.constant 0 : index
    %105 = vector.load %arg26[%c0_68, %c0_69] : memref<2x7xf32, #tpu.memory_space<vmem>>, vector<2x7xf32>
    tpu.vector_store %arg26[%c0_68, %c0_69], %104 {strides = array<i32>} : memref<2x7xf32, #tpu.memory_space<vmem>>, vector<2x7xf32>,
    %c0_70 = arith.constant 0 : index
    %c0_71 = arith.constant 0 : index
    %106 = vector.load %arg23[%c0_70, %c0_71] : memref<32x6xf32, #tpu.memory_space<vmem>>, vector<32x6xf32>
    %cst_72 = arith.constant dense<0.000000e+00> : vector<2x6xf32>
    %107 = tpu.matmul %38, %106, %cst_72 {dimension_numbers = #tpu.dot_dimension_numbers<[1], [0], [0], [1], [0, 0, 1, 1], [], []>} : vector<2x32xf32>, vector<32x6xf32>, vector<2x6xf32> -> vector<2x6xf32>
    %c0_73 = arith.constant 0 : index
    %c0_74 = arith.constant 0 : index
    %108 = vector.load %arg24[%c0_73, %c0_74] : memref<32x6xf32, #tpu.memory_space<vmem>>, vector<32x6xf32>
    %cst_75 = arith.constant dense<0.000000e+00> : vector<2x6xf32>
    %109 = tpu.matmul %78, %108, %cst_75 {dimension_numbers = #tpu.dot_dimension_numbers<[1], [0], [0], [1], [0, 0, 1, 1], [], []>} : vector<2x32xf32>, vector<32x6xf32>, vector<2x6xf32> -> vector<2x6xf32>
    %110 = arith.addf %107, %109 : vector<2x6xf32>
    %c0_76 = arith.constant 0 : index
    %c0_77 = arith.constant 0 : index
    %111 = vector.load %arg25[%c0_76, %c0_77] : memref<1x6xf32, #tpu.memory_space<vmem>>, vector<1x6xf32>
    %112 = vector.broadcast %111 : vector<1x6xf32> to vector<2x6xf32>
    %113 = arith.addf %110, %112 : vector<2x6xf32>
    %c0_78 = arith.constant 0 : index
    %c0_79 = arith.constant 0 : index
    %114 = vector.load %arg27[%c0_78, %c0_79] : memref<2x6xf32, #tpu.memory_space<vmem>>, vector<2x6xf32>
    tpu.vector_store %arg27[%c0_78, %c0_79], %113 {strides = array<i32>} : memref<2x6xf32, #tpu.memory_space<vmem>>, vector<2x6xf32>,
    return
  }
  func.func @transform_0(%arg0: i32) -> (i32, i32) {
    %c0_i32 = arith.constant 0 : i32
    %c0_i32_0 = arith.constant 0 : i32
    return %arg0, %c0_i32 : i32, i32
  }
  func.func @transform_1(%arg0: i32) -> (i32, i32) {
    %c0_i32 = arith.constant 0 : i32
    %c0_i32_0 = arith.constant 0 : i32
    return %arg0, %c0_i32 : i32, i32
  }
  func.func @transform_2(%arg0: i32) -> (i32, i32) {
    %c0_i32 = arith.constant 0 : i32
    %c0_i32_0 = arith.constant 0 : i32
    return %arg0, %c0_i32 : i32, i32
  }
  func.func @transform_3(%arg0: i32) -> (i32, i32, i32) {
    %c0_i32 = arith.constant 0 : i32
    %c0_i32_0 = arith.constant 0 : i32
    %c0_i32_1 = arith.constant 0 : i32
    return %c0_i32, %arg0, %c0_i32_0 : i32, i32, i32
  }
  func.func @transform_4(%arg0: i32) -> (i32, i32, i32) {
    %c0_i32 = arith.constant 0 : i32
    %c0_i32_0 = arith.constant 0 : i32
    %c0_i32_1 = arith.constant 0 : i32
    return %c0_i32, %arg0, %c0_i32_0 : i32, i32, i32
  }
  func.func @transform_5(%arg0: i32) -> (i32, i32, i32) {
    %c0_i32 = arith.constant 0 : i32
    %c0_i32_0 = arith.constant 0 : i32
    %c0_i32_1 = arith.constant 0 : i32
    return %arg0, %c0_i32, %c0_i32_0 : i32, i32, i32
  }
  func.func @transform_6(%arg0: i32) -> (i32, i32) {
    %c0_i32 = arith.constant 0 : i32
    %c0_i32_0 = arith.constant 0 : i32
    return %arg0, %c0_i32 : i32, i32
  }
  func.func @transform_7(%arg0: i32) -> (i32, i32) {
    %c0_i32 = arith.constant 0 : i32
    %c0_i32_0 = arith.constant 0 : i32
    %c0_i32_1 = arith.constant 0 : i32
    return %c0_i32, %c0_i32_0 : i32, i32
  }
  func.func @transform_8(%arg0: i32) -> (i32, i32) {
    %c0_i32 = arith.constant 0 : i32
    %c0_i32_0 = arith.constant 0 : i32
    %c0_i32_1 = arith.constant 0 : i32
    return %c0_i32, %c0_i32_0 : i32, i32
  }
  func.func @transform_9(%arg0: i32) -> (i32, i32) {
    %c0_i32 = arith.constant 0 : i32
    %c0_i32_0 = arith.constant 0 : i32
    %c0_i32_1 = arith.constant 0 : i32
    return %c0_i32, %c0_i32_0 : i32, i32
  }
  func.func @transform_10(%arg0: i32) -> (i32, i32) {
    %c0_i32 = arith.constant 0 : i32
    %c0_i32_0 = arith.constant 0 : i32
    %c0_i32_1 = arith.constant 0 : i32
    return %c0_i32, %c0_i32_0 : i32, i32
  }
  func.func @transform_11(%arg0: i32) -> (i32, i32) {
    %c0_i32 = arith.constant 0 : i32
    %c0_i32_0 = arith.constant 0 : i32
    %c0_i32_1 = arith.constant 0 : i32
    return %c0_i32, %c0_i32_0 : i32, i32
  }
  func.func @transform_12(%arg0: i32) -> (i32, i32) {
    %c0_i32 = arith.constant 0 : i32
    %c0_i32_0 = arith.constant 0 : i32
    %c0_i32_1 = arith.constant 0 : i32
    return %c0_i32, %c0_i32_0 : i32, i32
  }
  func.func @transform_13(%arg0: i32) -> (i32, i32) {
    %c0_i32 = arith.constant 0 : i32
    %c0_i32_0 = arith.constant 0 : i32
    %c0_i32_1 = arith.constant 0 : i32
    return %c0_i32, %c0_i32_0 : i32, i32
  }
  func.func @transform_14(%arg0: i32) -> (i32, i32) {
    %c0_i32 = arith.constant 0 : i32
    %c0_i32_0 = arith.constant 0 : i32
    %c0_i32_1 = arith.constant 0 : i32
    return %c0_i32, %c0_i32_0 : i32, i32
  }
  func.func @transform_15(%arg0: i32) -> (i32, i32) {
    %c0_i32 = arith.constant 0 : i32
    %c0_i32_0 = arith.constant 0 : i32
    %c0_i32_1 = arith.constant 0 : i32
    return %c0_i32, %c0_i32_0 : i32, i32
  }
  func.func @transform_16(%arg0: i32) -> (i32, i32) {
    %c0_i32 = arith.constant 0 : i32
    %c0_i32_0 = arith.constant 0 : i32
    %c0_i32_1 = arith.constant 0 : i32
    return %c0_i32, %c0_i32_0 : i32, i32
  }
  func.func @transform_17(%arg0: i32) -> (i32, i32) {
    %c0_i32 = arith.constant 0 : i32
    %c0_i32_0 = arith.constant 0 : i32
    %c0_i32_1 = arith.constant 0 : i32
    return %c0_i32, %c0_i32_0 : i32, i32
  }
  func.func @transform_18(%arg0: i32) -> (i32, i32) {
    %c0_i32 = arith.constant 0 : i32
    %c0_i32_0 = arith.constant 0 : i32
    %c0_i32_1 = arith.constant 0 : i32
    return %c0_i32, %c0_i32_0 : i32, i32
  }
  func.func @transform_19(%arg0: i32) -> (i32, i32) {
    %c0_i32 = arith.constant 0 : i32
    %c0_i32_0 = arith.constant 0 : i32
    %c0_i32_1 = arith.constant 0 : i32
    return %c0_i32, %c0_i32_0 : i32, i32
  }
  func.func @transform_20(%arg0: i32) -> (i32, i32) {
    %c0_i32 = arith.constant 0 : i32
    %c0_i32_0 = arith.constant 0 : i32
    %c0_i32_1 = arith.constant 0 : i32
    return %c0_i32, %c0_i32_0 : i32, i32
  }
  func.func @transform_21(%arg0: i32) -> (i32, i32) {
    %c0_i32 = arith.constant 0 : i32
    %c0_i32_0 = arith.constant 0 : i32
    %c0_i32_1 = arith.constant 0 : i32
    return %c0_i32, %c0_i32_0 : i32, i32
  }
  func.func @transform_22(%arg0: i32) -> (i32, i32) {
    %c0_i32 = arith.constant 0 : i32
    %c0_i32_0 = arith.constant 0 : i32
    %c0_i32_1 = arith.constant 0 : i32
    return %c0_i32, %c0_i32_0 : i32, i32
  }
  func.func @transform_23(%arg0: i32) -> (i32, i32) {
    %c0_i32 = arith.constant 0 : i32
    %c0_i32_0 = arith.constant 0 : i32
    %c0_i32_1 = arith.constant 0 : i32
    return %c0_i32, %c0_i32_0 : i32, i32
  }
  func.func @transform_24(%arg0: i32) -> (i32, i32) {
    %c0_i32 = arith.constant 0 : i32
    %c0_i32_0 = arith.constant 0 : i32
    %c0_i32_1 = arith.constant 0 : i32
    return %c0_i32, %c0_i32_0 : i32, i32
  }
  func.func @transform_25(%arg0: i32) -> (i32, i32) {
    %c0_i32 = arith.constant 0 : i32
    %c0_i32_0 = arith.constant 0 : i32
    return %arg0, %c0_i32 : i32, i32
  }
  func.func @transform_26(%arg0: i32) -> (i32, i32) {
    %c0_i32 = arith.constant 0 : i32
    %c0_i32_0 = arith.constant 0 : i32
    return %arg0, %c0_i32 : i32, i32
  }
  func.func @transform_27(%arg0: i32) -> (i32, i32) {
    %c0_i32 = arith.constant 0 : i32
    %c0_i32_0 = arith.constant 0 : i32
    return %arg0, %c0_i32 : i32, i32
  }
  func.func @transform_28(%arg0: i32) -> (i32, i32) {
    %c0_i32 = arith.constant 0 : i32
    %c0_i32_0 = arith.constant 0 : i32
    return %arg0, %c0_i32 : i32, i32
  }
}

</mosaic_0001>

<llo_original>
// kernel: prediction_forward.1
$region0: #{prediction_forward.1}
  #allocation0 [shape = 'u32[]', space=smem, size = 0x4, offset = 0x4, fixed_abs, tag = 'smem constant byte address 0x4 - core index']
  #allocation1 [shape = 'u32[144,128]{1,0:T(1,128)}', space=vmem, size = 0x12000, scoped, tag = 'internal scratch']
  #allocation2 [shape = 'f32[1,1]{1,0:T(1,128)S(1)}', space=vmem, size = 0x200, scoped, tag = 'scoped memory for prediction_forward.1']
  %s0 = inlined_call_operand.vmem [shape: f32[2,32], index: 0, kind: input, shape index: {}]
  %s1 = inlined_call_operand.vmem [shape: f32[2,32], index: 1, kind: input, shape index: {}]
  %s2 = inlined_call_operand.vmem [shape: f32[2,1], index: 2, kind: input, shape index: {}]
  %s3 = inlined_call_operand.vmem [shape: f32[8,2,32], index: 3, kind: input, shape index: {}]
  %s4 = inlined_call_operand.vmem [shape: s32[8,2,1], index: 4, kind: input, shape index: {}]
  %s5 = inlined_call_operand.vmem [shape: f32[2,7,32], index: 5, kind: input, shape index: {}]
  %s6 = inlined_call_operand.vmem [shape: s32[2,7], index: 6, kind: input, shape index: {}]
  %s7 = inlined_call_operand.vmem [shape: f32[32,64], index: 7, kind: input, shape index: {}]
  %s8 = inlined_call_operand.vmem [shape: f32[1,64], index: 8, kind: input, shape index: {}]
  %s9 = inlined_call_operand.vmem [shape: f32[32,64], index: 9, kind: input, shape index: {}]
  %s10 = inlined_call_operand.vmem [shape: f32[32,64], index: 10, kind: input, shape index: {}]
  %s11 = inlined_call_operand.vmem [shape: f32[1,64], index: 11, kind: input, shape index: {}]
  %s12 = inlined_call_operand.vmem [shape: f32[32,32], index: 12, kind: input, shape index: {}]
  %s13 = inlined_call_operand.vmem [shape: f32[32,32], index: 13, kind: input, shape index: {}]
  %s14 = inlined_call_operand.vmem [shape: f32[1,32], index: 14, kind: input, shape index: {}]
  %s15 = inlined_call_operand.vmem [shape: f32[1,32], index: 15, kind: input, shape index: {}]
  %s16 = inlined_call_operand.<no memory space> [shape: f32[1,1], index: 16, kind: input, shape index: {}]
  %s17 = inlined_call_operand.vmem [shape: f32[32,32], index: 17, kind: input, shape index: {}]
  %s18 = inlined_call_operand.vmem [shape: f32[32,32], index: 18, kind: input, shape index: {}]
  %s19 = inlined_call_operand.vmem [shape: f32[32,32], index: 19, kind: input, shape index: {}]
  %s20 = inlined_call_operand.vmem [shape: f32[1,32], index: 20, kind: input, shape index: {}]
  %s21 = inlined_call_operand.vmem [shape: f32[1,32], index: 21, kind: input, shape index: {}]
  %s22 = inlined_call_operand.vmem [shape: f32[32,6], index: 22, kind: input, shape index: {}]
  %s23 = inlined_call_operand.vmem [shape: f32[32,6], index: 23, kind: input, shape index: {}]
  %s24 = inlined_call_operand.vmem [shape: f32[1,6], index: 24, kind: input, shape index: {}]
  %s25 = inlined_call_operand.hbm [shape: f32[2,7], index: 25, kind: output, shape index: {0}]
  %s26 = inlined_call_operand.hbm [shape: f32[2,6], index: 26, kind: output, shape index: {1}]
  %s27 = inlined_call_operand.hbm [shape: f32[2,32], index: 27, kind: output, shape index: {2}]
  %s28 = inlined_call_operand.hbm [shape: f32[2,32], index: 28, kind: output, shape index: {3}]
  %29 = xla_tuple %s25, %s26, %s27, %s28
  %s30 = sld [smem:[#allocation0]]
  $region134: #{prediction_forward.1} parent=0
    _
  %s32 = ssub.s32 1, %s30
  %s33 = scalar_select 0, %s32, %s30
  %v34 = vstv %s16
  %35 = vst [vmem:[#allocation2] sm:$0x1] %v34
  $region1: #{prediction_forward.1} parent=0
    #allocation3 [shape = 'u8[1024]{0}', space=vmem, size = 0x400, scoped, tag = 'output window, operand 0, single buffered']
    #allocation4 [shape = 's32[1]{0}', space=sflag, size = 0x4, scoped, tag = 'scoped memory for prediction_forward.1']
    #allocation5 [shape = 'u8[1024]{0}', space=vmem, size = 0x400, scoped, tag = 'output window, operand 1, single buffered']
    #allocation6 [shape = 's32[1]{0}', space=sflag, size = 0x4, scoped, tag = 'scoped memory for prediction_forward.1']
    #allocation7 [shape = 'u8[1024]{0}', space=vmem, size = 0x400, scoped, tag = 'output window, operand 2, single buffered']
    #allocation8 [shape = 'u8[1024]{0}', space=vmem, size = 0x400, scoped, tag = 'output window, operand 3, single buffered']
    #allocation9 [shape = 's32[1]{0}', space=sflag, size = 0x4, scoped, tag = 'scoped memory for prediction_forward.1']
    %36 = vsyncpa [#allocation4], 0
    %37 = vsyncpa [#allocation6], 0
    %38 = vsyncpa [#allocation9], 0
    // Predicated region
    $region2: #{prediction_forward.1} parent=1 // pred_check
      _
    $region3: #{prediction_forward.1} parent=1 // pred_check_branch
      %40 = sbr.rel (0) target = $region5
    $region4: #{prediction_forward.1} parent=1 // pred_region
      _
    $region5: #{prediction_forward.1} parent=1 // pred_fallthru
      _
    // Predicated region
    $region6: #{prediction_forward.1} parent=1 // pred_check
      _
    $region7: #{prediction_forward.1} parent=1 // pred_check_branch
      %42 = sbr.rel (0) target = $region9
    $region8: #{prediction_forward.1} parent=1 // pred_region
      _
    $region9: #{prediction_forward.1} parent=1 // pred_fallthru
      _
    // Predicated region
    $region10: #{prediction_forward.1} parent=1 // pred_check
      _
    $region11: #{prediction_forward.1} parent=1 // pred_check_branch
      %44 = sbr.rel (0) target = $region13
    $region12: #{prediction_forward.1} parent=1 // pred_region
      _
    $region13: #{prediction_forward.1} parent=1 // pred_fallthru
      _
    // Predicated region
    $region14: #{prediction_forward.1} parent=1 // pred_check
      _
    $region15: #{prediction_forward.1} parent=1 // pred_check_branch
      %46 = sbr.rel (0) target = $region17
    $region16: #{prediction_forward.1} parent=1 // pred_region
      _
    $region17: #{prediction_forward.1} parent=1 // pred_fallthru
      _
    // Predicated region
    $region18: #{prediction_forward.1} parent=1 // pred_check
      _
    $region19: #{prediction_forward.1} parent=1 // pred_check_branch
      %48 = sbr.rel (0) target = $region21
    $region20: #{prediction_forward.1} parent=1 // pred_region
      _
    $region21: #{prediction_forward.1} parent=1 // pred_fallthru
      _
    // Predicated region
    $region22: #{prediction_forward.1} parent=1 // pred_check
      _
    $region23: #{prediction_forward.1} parent=1 // pred_check_branch
      %50 = sbr.rel (0) target = $region25
    $region24: #{prediction_forward.1} parent=1 // pred_region
      _
    $region25: #{prediction_forward.1} parent=1 // pred_fallthru
      _
    // Predicated region
    $region26: #{prediction_forward.1} parent=1 // pred_check
      _
    $region27: #{prediction_forward.1} parent=1 // pred_check_branch
      %52 = sbr.rel (0) target = $region29
    $region28: #{prediction_forward.1} parent=1 // pred_region
      _
    $region29: #{prediction_forward.1} parent=1 // pred_fallthru
      _
    // Predicated region
    $region30: #{prediction_forward.1} parent=1 // pred_check
      _
    $region31: #{prediction_forward.1} parent=1 // pred_check_branch
      %54 = sbr.rel (0) target = $region33
    $region32: #{prediction_forward.1} parent=1 // pred_region
      _
    $region33: #{prediction_forward.1} parent=1 // pred_fallthru
      _
    // Predicated region
    $region34: #{prediction_forward.1} parent=1 // pred_check
      _
    $region35: #{prediction_forward.1} parent=1 // pred_check_branch
      %56 = sbr.rel (0) target = $region37
    $region36: #{prediction_forward.1} parent=1 // pred_region
      _
    $region37: #{prediction_forward.1} parent=1 // pred_fallthru
      _
    // Predicated region
    $region38: #{prediction_forward.1} parent=1 // pred_check
      _
    $region39: #{prediction_forward.1} parent=1 // pred_check_branch
      %58 = sbr.rel (0) target = $region41
    $region40: #{prediction_forward.1} parent=1 // pred_region
      _
    $region41: #{prediction_forward.1} parent=1 // pred_fallthru
      _
    // Predicated region
    $region42: #{prediction_forward.1} parent=1 // pred_check
      _
    $region43: #{prediction_forward.1} parent=1 // pred_check_branch
      %60 = sbr.rel (0) target = $region45
    $region44: #{prediction_forward.1} parent=1 // pred_region
      _
    $region45: #{prediction_forward.1} parent=1 // pred_fallthru
      _
    // Predicated region
    $region46: #{prediction_forward.1} parent=1 // pred_check
      _
    $region47: #{prediction_forward.1} parent=1 // pred_check_branch
      %62 = sbr.rel (0) target = $region49
    $region48: #{prediction_forward.1} parent=1 // pred_region
      _
    $region49: #{prediction_forward.1} parent=1 // pred_fallthru
      _
    // Predicated region
    $region50: #{prediction_forward.1} parent=1 // pred_check
      _
    $region51: #{prediction_forward.1} parent=1 // pred_check_branch
      %64 = sbr.rel (0) target = $region53
    $region52: #{prediction_forward.1} parent=1 // pred_region
      _
    $region53: #{prediction_forward.1} parent=1 // pred_fallthru
      _
    // Predicated region
    $region54: #{prediction_forward.1} parent=1 // pred_check
      _
    $region55: #{prediction_forward.1} parent=1 // pred_check_branch
      %66 = sbr.rel (0) target = $region57
    $region56: #{prediction_forward.1} parent=1 // pred_region
      _
    $region57: #{prediction_forward.1} parent=1 // pred_fallthru
      _
    // Predicated region
    $region58: #{prediction_forward.1} parent=1 // pred_check
      _
    $region59: #{prediction_forward.1} parent=1 // pred_check_branch
      %68 = sbr.rel (0) target = $region61
    $region60: #{prediction_forward.1} parent=1 // pred_region
      _
    $region61: #{prediction_forward.1} parent=1 // pred_fallthru
      _
    // Predicated region
    $region62: #{prediction_forward.1} parent=1 // pred_check
      _
    $region63: #{prediction_forward.1} parent=1 // pred_check_branch
      %70 = sbr.rel (0) target = $region65
    $region64: #{prediction_forward.1} parent=1 // pred_region
      _
    $region65: #{prediction_forward.1} parent=1 // pred_fallthru
      _
    // Predicated region
    $region66: #{prediction_forward.1} parent=1 // pred_check
      _
    $region67: #{prediction_forward.1} parent=1 // pred_check_branch
      %72 = sbr.rel (0) target = $region69
    $region68: #{prediction_forward.1} parent=1 // pred_region
      _
    $region69: #{prediction_forward.1} parent=1 // pred_fallthru
      _
    // Predicated region
    $region70: #{prediction_forward.1} parent=1 // pred_check
      _
    $region71: #{prediction_forward.1} parent=1 // pred_check_branch
      %74 = sbr.rel (0) target = $region73
    $region72: #{prediction_forward.1} parent=1 // pred_region
      _
    $region73: #{prediction_forward.1} parent=1 // pred_fallthru
      _
    // Predicated region
    $region74: #{prediction_forward.1} parent=1 // pred_check
      _
    $region75: #{prediction_forward.1} parent=1 // pred_check_branch
      %76 = sbr.rel (0) target = $region77
    $region76: #{prediction_forward.1} parent=1 // pred_region
      _
    $region77: #{prediction_forward.1} parent=1 // pred_fallthru
      _
    // Predicated region
    $region78: #{prediction_forward.1} parent=1 // pred_check
      _
    $region79: #{prediction_forward.1} parent=1 // pred_check_branch
      %78 = sbr.rel (0) target = $region81
    $region80: #{prediction_forward.1} parent=1 // pred_region
      _
    $region81: #{prediction_forward.1} parent=1 // pred_fallthru
      _
    // Predicated region
    $region82: #{prediction_forward.1} parent=1 // pred_check
      _
    $region83: #{prediction_forward.1} parent=1 // pred_check_branch
      %80 = sbr.rel (0) target = $region85
    $region84: #{prediction_forward.1} parent=1 // pred_region
      _
    $region85: #{prediction_forward.1} parent=1 // pred_fallthru
      _
    // Predicated region
    $region86: #{prediction_forward.1} parent=1 // pred_check
      _
    $region87: #{prediction_forward.1} parent=1 // pred_check_branch
      %82 = sbr.rel (0) target = $region89
    $region88: #{prediction_forward.1} parent=1 // pred_region
      _
    $region89: #{prediction_forward.1} parent=1 // pred_fallthru
      _
    // Predicated region
    $region90: #{prediction_forward.1} parent=1 // pred_check
      _
    $region91: #{prediction_forward.1} parent=1 // pred_check_branch
      %84 = sbr.rel (0) target = $region93
    $region92: #{prediction_forward.1} parent=1 // pred_region
      _
    $region93: #{prediction_forward.1} parent=1 // pred_fallthru
      _
    // Predicated region
    $region94: #{prediction_forward.1} parent=1 // pred_check
      _
    $region95: #{prediction_forward.1} parent=1 // pred_check_branch
      %86 = sbr.rel (0) target = $region97
    $region96: #{prediction_forward.1} parent=1 // pred_region
      _
    $region97: #{prediction_forward.1} parent=1 // pred_fallthru
      _
    // Predicated region
    $region98: #{prediction_forward.1} parent=1 // pred_check
      _
    $region99: #{prediction_forward.1} parent=1 // pred_check_branch
      %88 = sbr.rel (0) target = $region101
    $region100: #{prediction_forward.1} parent=1 // pred_region
      _
    $region101: #{prediction_forward.1} parent=1 // pred_fallthru
      _
    %v89 = vld [vmem:[%s0] sm:$0x3]
    %v90 = vld [vmem:[%s1] sm:$0x3]
    %v91 = vld [vmem:[%s2] sm:$0x3]
    %v92 = vld [vmem:[%s7] sm:$0xff]
    %v93 = vld [vmem:[%s7 + $0x8] sm:$0xff]
    %v94 = vld [vmem:[%s7 + $0x10] sm:$0xff]
    %v95 = vld [vmem:[%s7 + $0x18] sm:$0xff]
    %v96 = vld [vmem:[%s8] sm:$0x1]
    %v98 = vlaneseq
    %v99 = vshrl.u32 %v98, 7
    %v100 = vsub.s32 0, %v99
    %v101 = vrot.slane %v96, %v100
    %vm103 = vcmask 261120
    %v105 = vsel %vm103, %v89, 0
    %107 = vmatprep.subr.mxu0 0.0
    %108 = vmatpush1.msra.mxu0 %v92
    %109 = vmatprep.subr.mxu0 0.0
    %110 = vmatpush1.msra.mxu0 %v93
    %111 = vmatprep.subr.mxu0 0.0
    %112 = vmatpush1.msra.mxu0 %v94
    %113 = vmatprep.subr.mxu0 0.0
    %114 = vmatpush1.msra.mxu0 %v95
    %115 = vmatprep.subr.mxu0 0.0
    %116 = vmatpush1.msra.mxu0 0.0
    %117 = vmatprep.subr.mxu0 0.0
    %118 = vmatpush1.msra.mxu0 0.0
    %119 = vmatprep.subr.mxu0 0.0
    %120 = vmatpush1.msra.mxu0 0.0
    %121 = vmatprep.subr.mxu0 0.0
    %122 = vmatpush1.msra.mxu0 0.0
    %123 = vmatprep.subr.mxu0 0.0
    %124 = vmatpush1.msra.mxu0 0.0
    %125 = vmatprep.subr.mxu0 0.0
    %126 = vmatpush1.msra.mxu0 0.0
    %127 = vmatprep.subr.mxu0 0.0
    %128 = vmatpush1.msra.mxu0 0.0
    %129 = vmatprep.subr.mxu0 0.0
    %130 = vmatpush1.msra.mxu0 0.0
    %131 = vmatprep.subr.mxu0 0.0
    %132 = vmatpush1.msra.mxu0 0.0
    %133 = vmatprep.subr.mxu0 0.0
    %134 = vmatpush1.msra.mxu0 0.0
    %135 = vmatprep.subr.mxu0 0.0
    %136 = vmatpush1.msra.mxu0 0.0
    %137 = vmatprep.subr.mxu0 0.0
    %138 = vmatpush1.msra.mxu0 0.0
    %139 = vmatprep.subr.mxu0 0.0
    %140 = vmatpush1.msra.mxu0 0.0
    %141 = vmatprep.subr.mxu0 0.0
    %142 = vmatpush1.msra.mxu0 0.0
    %143 = vmatprep.subr.mxu0 0.0
    %144 = vmatpush1.msra.mxu0 0.0
    %145 = vmatprep.subr.mxu0 0.0
    %146 = vmatpush1.msra.mxu0 0.0
    %147 = vmatprep.subr.mxu0 0.0
    %148 = vmatpush1.msra.mxu0 0.0
    %149 = vmatprep.subr.mxu0 0.0
    %150 = vmatpush1.msra.mxu0 0.0
    %151 = vmatprep.subr.mxu0 0.0
    %152 = vmatpush1.msra.mxu0 0.0
    %153 = vmatprep.subr.mxu0 0.0
    %154 = vmatpush1.msra.mxu0 0.0
    %155 = vmatprep.subr.mxu0 0.0
    %156 = vmatpush1.msra.mxu0 0.0
    %157 = vmatprep.subr.mxu0 0.0
    %158 = vmatpush1.msra.mxu0 0.0
    %159 = vmatprep.subr.mxu0 0.0
    %160 = vmatpush1.msra.mxu0 0.0
    %161 = vmatprep.subr.mxu0 0.0
    %162 = vmatpush1.msra.mxu0 0.0
    %163 = vmatprep.subr.mxu0 0.0
    %164 = vmatpush1.msra.mxu0 0.0
    %165 = vmatprep.subr.mxu0 0.0
    %166 = vmatpush1.msra.mxu0 0.0
    %167 = vmatprep.subr.mxu0 0.0
    %168 = vmatpush1.msra.mxu0 0.0
    %169 = vmatprep.subr.mxu0 0.0
    %170 = vmatpush1.msra.mxu0 0.0
    %171 = vmatprep.mubr.f32.mxu0 0.0
    %172 = vmatmul.mubr.f32.gmra.mrb[0].mxu0 %v105
    %v173 = vpop.f32.mrb[0].mxu0
    %v174 = vadd.f32 %v101, %v173
    %v175 = vpop.f32.mrb[0].mxu0
    %176 = vdwg.mxu0
    %v177 = vtanh.pop %v174
    %v178 = vxor.u32 %v174, 2147483648
    %v179 = vmul.f32 %v178, 1.442695
    %v180 = vpow.pop %v179
    %v181 = vadd.f32 %v180, 1.0
    %v182 = vrcp.pop %v181
    %v183 = vmul.f32 1.0, %v182
    %185 = vrot.lane.b32.xlu0 %v183, 96
    %v186 = vpop.permute.xlu0 %185
    %v188 = vmul.f32 %v177, %v186
    %v189 = vld [vmem:[%s9] sm:$0xff]
    %v190 = vld [vmem:[%s9 + $0x8] sm:$0xff]
    %v191 = vld [vmem:[%s9 + $0x10] sm:$0xff]
    %v192 = vld [vmem:[%s9 + $0x18] sm:$0xff]
    %v193 = vld [vmem:[%s10] sm:$0xff]
    %v194 = vld [vmem:[%s10 + $0x8] sm:$0xff]
    %v195 = vld [vmem:[%s10 + $0x10] sm:$0xff]
    %v196 = vld [vmem:[%s10 + $0x18] sm:$0xff]
    %197 = vmatprep.subr.mxu0 0.0
    %198 = vmatpush1.msra.mxu0 %v193
    %199 = vmatprep.subr.mxu0 0.0
    %200 = vmatpush1.msra.mxu0 %v194
    %201 = vmatprep.subr.mxu0 0.0
    %202 = vmatpush1.msra.mxu0 %v195
    %203 = vmatprep.subr.mxu0 0.0
    %204 = vmatpush1.msra.mxu0 %v196
    %205 = vmatprep.subr.mxu0 0.0
    %206 = vmatpush1.msra.mxu0 0.0
    %207 = vmatprep.subr.mxu0 0.0
    %208 = vmatpush1.msra.mxu0 0.0
    %209 = vmatprep.subr.mxu0 0.0
    %210 = vmatpush1.msra.mxu0 0.0
    %211 = vmatprep.subr.mxu0 0.0
    %212 = vmatpush1.msra.mxu0 0.0
    %213 = vmatprep.subr.mxu0 0.0
    %214 = vmatpush1.msra.mxu0 0.0
    %215 = vmatprep.subr.mxu0 0.0
    %216 = vmatpush1.msra.mxu0 0.0
    %217 = vmatprep.subr.mxu0 0.0
    %218 = vmatpush1.msra.mxu0 0.0
    %219 = vmatprep.subr.mxu0 0.0
    %220 = vmatpush1.msra.mxu0 0.0
    %221 = vmatprep.subr.mxu0 0.0
    %222 = vmatpush1.msra.mxu0 0.0
    %223 = vmatprep.subr.mxu0 0.0
    %224 = vmatpush1.msra.mxu0 0.0
    %225 = vmatprep.subr.mxu0 0.0
    %226 = vmatpush1.msra.mxu0 0.0
    %227 = vmatprep.subr.mxu0 0.0
    %228 = vmatpush1.msra.mxu0 0.0
    %229 = vmatprep.subr.mxu0 0.0
    %230 = vmatpush1.msra.mxu0 0.0
    %231 = vmatprep.subr.mxu0 0.0
    %232 = vmatpush1.msra.mxu0 0.0
    %233 = vmatprep.subr.mxu0 0.0
    %234 = vmatpush1.msra.mxu0 0.0
    %235 = vmatprep.subr.mxu0 0.0
    %236 = vmatpush1.msra.mxu0 0.0
    %237 = vmatprep.subr.mxu0 0.0
    %238 = vmatpush1.msra.mxu0 0.0
    %239 = vmatprep.subr.mxu0 0.0
    %240 = vmatpush1.msra.mxu0 0.0
    %241 = vmatprep.subr.mxu0 0.0
    %242 = vmatpush1.msra.mxu0 0.0
    %243 = vmatprep.subr.mxu0 0.0
    %244 = vmatpush1.msra.mxu0 0.0
    %245 = vmatprep.subr.mxu0 0.0
    %246 = vmatpush1.msra.mxu0 0.0
    %247 = vmatprep.subr.mxu0 0.0
    %248 = vmatpush1.msra.mxu0 0.0
    %249 = vmatprep.subr.mxu0 0.0
    %250 = vmatpush1.msra.mxu0 0.0
    %251 = vmatprep.subr.mxu0 0.0
    %252 = vmatpush1.msra.mxu0 0.0
    %253 = vmatprep.subr.mxu0 0.0
    %254 = vmatpush1.msra.mxu0 0.0
    %255 = vmatprep.subr.mxu0 0.0
    %256 = vmatpush1.msra.mxu0 0.0
    %257 = vmatprep.subr.mxu0 0.0
    %258 = vmatpush1.msra.mxu0 0.0
    %259 = vmatprep.subr.mxu0 0.0
    %260 = vmatpush1.msra.mxu0 0.0
    %261 = vmatprep.mubr.f32.mxu0 0.0
    %262 = vmatmul.mubr.f32.gmra.mrb[0].mxu0 %v105
    %v263 = vpop.f32.mrb[0].mxu0
    %v264 = vadd.f32 0.0, %v263
    %v265 = vpop.f32.mrb[0].mxu0
    %266 = vdwg.mxu0
    %v268 = vsel %vm103, %v90, 0
    %270 = vmatprep.subr.mxu0 0.0
    %271 = vmatpush1.msra.mxu0 %v189
    %272 = vmatprep.subr.mxu0 0.0
    %273 = vmatpush1.msra.mxu0 %v190
    %274 = vmatprep.subr.mxu0 0.0
    %275 = vmatpush1.msra.mxu0 %v191
    %276 = vmatprep.subr.mxu0 0.0
    %277 = vmatpush1.msra.mxu0 %v192
    %278 = vmatprep.subr.mxu0 0.0
    %279 = vmatpush1.msra.mxu0 0.0
    %280 = vmatprep.subr.mxu0 0.0
    %281 = vmatpush1.msra.mxu0 0.0
    %282 = vmatprep.subr.mxu0 0.0
    %283 = vmatpush1.msra.mxu0 0.0
    %284 = vmatprep.subr.mxu0 0.0
    %285 = vmatpush1.msra.mxu0 0.0
    %286 = vmatprep.subr.mxu0 0.0
    %287 = vmatpush1.msra.mxu0 0.0
    %288 = vmatprep.subr.mxu0 0.0
    %289 = vmatpush1.msra.mxu0 0.0
    %290 = vmatprep.subr.mxu0 0.0
    %291 = vmatpush1.msra.mxu0 0.0
    %292 = vmatprep.subr.mxu0 0.0
    %293 = vmatpush1.msra.mxu0 0.0
    %294 = vmatprep.subr.mxu0 0.0
    %295 = vmatpush1.msra.mxu0 0.0
    %296 = vmatprep.subr.mxu0 0.0
    %297 = vmatpush1.msra.mxu0 0.0
    %298 = vmatprep.subr.mxu0 0.0
    %299 = vmatpush1.msra.mxu0 0.0
    %300 = vmatprep.subr.mxu0 0.0
    %301 = vmatpush1.msra.mxu0 0.0
    %302 = vmatprep.subr.mxu0 0.0
    %303 = vmatpush1.msra.mxu0 0.0
    %304 = vmatprep.subr.mxu0 0.0
    %305 = vmatpush1.msra.mxu0 0.0
    %306 = vmatprep.subr.mxu0 0.0
    %307 = vmatpush1.msra.mxu0 0.0
    %308 = vmatprep.subr.mxu0 0.0
    %309 = vmatpush1.msra.mxu0 0.0
    %310 = vmatprep.subr.mxu0 0.0
    %311 = vmatpush1.msra.mxu0 0.0
    %312 = vmatprep.subr.mxu0 0.0
    %313 = vmatpush1.msra.mxu0 0.0
    %314 = vmatprep.subr.mxu0 0.0
    %315 = vmatpush1.msra.mxu0 0.0
    %316 = vmatprep.subr.mxu0 0.0
    %317 = vmatpush1.msra.mxu0 0.0
    %318 = vmatprep.subr.mxu0 0.0
    %319 = vmatpush1.msra.mxu0 0.0
    %320 = vmatprep.subr.mxu0 0.0
    %321 = vmatpush1.msra.mxu0 0.0
    %322 = vmatprep.subr.mxu0 0.0
    %323 = vmatpush1.msra.mxu0 0.0
    %324 = vmatprep.subr.mxu0 0.0
    %325 = vmatpush1.msra.mxu0 0.0
    %326 = vmatprep.subr.mxu0 0.0
    %327 = vmatpush1.msra.mxu0 0.0
    %328 = vmatprep.subr.mxu0 0.0
    %329 = vmatpush1.msra.mxu0 0.0
    %330 = vmatprep.subr.mxu0 0.0
    %331 = vmatpush1.msra.mxu0 0.0
    %332 = vmatprep.subr.mxu0 0.0
    %333 = vmatpush1.msra.mxu0 0.0
    %334 = vmatprep.mubr.f32.mxu0 0.0
    %335 = vmatmul.mubr.f32.gmra.mrb[0].mxu0 %v268
    %v336 = vpop.f32.mrb[0].mxu0
    %v337 = vadd.f32 %v264, %v336
    %v338 = vpop.f32.mrb[0].mxu0
    %339 = vdwg.mxu0
    %v340 = vld [vmem:[%s11] sm:$0x1]
    %v342 = vlaneseq
    %v343 = vshrl.u32 %v342, 7
    %v344 = vsub.s32 0, %v343
    %v345 = vrot.slane %v340, %v344
    %v347 = vadd.f32 %v337, %v345
    %v348 = vtanh.pop %v347
    %v349 = vxor.u32 %v347, 2147483648
    %v350 = vmul.f32 %v349, 1.442695
    %v351 = vpow.pop %v350
    %v352 = vadd.f32 %v351, 1.0
    %v353 = vrcp.pop %v352
    %v354 = vmul.f32 1.0, %v353
    %356 = vrot.lane.b32.xlu0 %v354, 96
    %v357 = vpop.permute.xlu0 %356
    %v359 = vmul.f32 %v348, %v357
    %vm360 = vcmp.gt.f32.partialorder %v91, 0.5
    %v361 = vsel %vm360, 1, 0
    %362 = vset.pattern.permute.xlu0 0
    %363 = vperm.xlu0 %362, %v361
    %v364 = vpop.permute.xlu0 %363
    %vm365 = vcmp.eq.s32.totalorder %v364, 1
    %v366 = vsel %vm365, %v359, %v188
    %vm367 = vcmask 254976
    %368 = vst.msk [vmem:[#allocation7] sm:$0x3] %vm367, %v366
    %v369 = vld [vmem:[%s3] sm:$0x3]
    %v370 = vld [vmem:[%s3 + $0x2] sm:$0x3]
    %v371 = vld [vmem:[%s3 + $0x4] sm:$0x3]
    %v372 = vld [vmem:[%s3 + $0x6] sm:$0x3]
    %v373 = vld [vmem:[%s3 + $0x8] sm:$0x3]
    %v374 = vld [vmem:[%s3 + $0xa] sm:$0x3]
    %v375 = vld [vmem:[%s3 + $0xc] sm:$0x3]
    %v376 = vld [vmem:[%s3 + $0xe] sm:$0x3]
    %v377 = vld [vmem:[%s12] sm:$0xff]
    %v378 = vld [vmem:[%s12 + $0x8] sm:$0xff]
    %v379 = vld [vmem:[%s12 + $0x10] sm:$0xff]
    %v380 = vld [vmem:[%s12 + $0x18] sm:$0xff]
    %v381 = vld [vmem:[%s14] sm:$0x1]
    %v383 = vlaneseq
    %v384 = vshrl.u32 %v383, 7
    %v385 = vsub.s32 0, %v384
    %v386 = vrot.slane %v381, %v385
    %v389 = vsel %vm103, %v366, 0
    %391 = vmatprep.subr.mxu0 0.0
    %392 = vmatpush1.msra.mxu0 %v377
    %393 = vmatprep.subr.mxu0 0.0
    %394 = vmatpush1.msra.mxu0 %v378
    %395 = vmatprep.subr.mxu0 0.0
    %396 = vmatpush1.msra.mxu0 %v379
    %397 = vmatprep.subr.mxu0 0.0
    %398 = vmatpush1.msra.mxu0 %v380
    %399 = vmatprep.subr.mxu0 0.0
    %400 = vmatpush1.msra.mxu0 0.0
    %401 = vmatprep.subr.mxu0 0.0
    %402 = vmatpush1.msra.mxu0 0.0
    %403 = vmatprep.subr.mxu0 0.0
    %404 = vmatpush1.msra.mxu0 0.0
    %405 = vmatprep.subr.mxu0 0.0
    %406 = vmatpush1.msra.mxu0 0.0
    %407 = vmatprep.subr.mxu0 0.0
    %408 = vmatpush1.msra.mxu0 0.0
    %409 = vmatprep.subr.mxu0 0.0
    %410 = vmatpush1.msra.mxu0 0.0
    %411 = vmatprep.subr.mxu0 0.0
    %412 = vmatpush1.msra.mxu0 0.0
    %413 = vmatprep.subr.mxu0 0.0
    %414 = vmatpush1.msra.mxu0 0.0
    %415 = vmatprep.subr.mxu0 0.0
    %416 = vmatpush1.msra.mxu0 0.0
    %417 = vmatprep.subr.mxu0 0.0
    %418 = vmatpush1.msra.mxu0 0.0
    %419 = vmatprep.subr.mxu0 0.0
    %420 = vmatpush1.msra.mxu0 0.0
    %421 = vmatprep.subr.mxu0 0.0
    %422 = vmatpush1.msra.mxu0 0.0
    %423 = vmatprep.subr.mxu0 0.0
    %424 = vmatpush1.msra.mxu0 0.0
    %425 = vmatprep.subr.mxu0 0.0
    %426 = vmatpush1.msra.mxu0 0.0
    %427 = vmatprep.subr.mxu0 0.0
    %428 = vmatpush1.msra.mxu0 0.0
    %429 = vmatprep.subr.mxu0 0.0
    %430 = vmatpush1.msra.mxu0 0.0
    %431 = vmatprep.subr.mxu0 0.0
    %432 = vmatpush1.msra.mxu0 0.0
    %433 = vmatprep.subr.mxu0 0.0
    %434 = vmatpush1.msra.mxu0 0.0
    %435 = vmatprep.subr.mxu0 0.0
    %436 = vmatpush1.msra.mxu0 0.0
    %437 = vmatprep.subr.mxu0 0.0
    %438 = vmatpush1.msra.mxu0 0.0
    %439 = vmatprep.subr.mxu0 0.0
    %440 = vmatpush1.msra.mxu0 0.0
    %441 = vmatprep.subr.mxu0 0.0
    %442 = vmatpush1.msra.mxu0 0.0
    %443 = vmatprep.subr.mxu0 0.0
    %444 = vmatpush1.msra.mxu0 0.0
    %445 = vmatprep.subr.mxu0 0.0
    %446 = vmatpush1.msra.mxu0 0.0
    %447 = vmatprep.subr.mxu0 0.0
    %448 = vmatpush1.msra.mxu0 0.0
    %449 = vmatprep.subr.mxu0 0.0
    %450 = vmatpush1.msra.mxu0 0.0
    %451 = vmatprep.subr.mxu0 0.0
    %452 = vmatpush1.msra.mxu0 0.0
    %453 = vmatprep.subr.mxu0 0.0
    %454 = vmatpush1.msra.mxu0 0.0
    %455 = vmatprep.mubr.f32.mxu0 0.0
    %456 = vmatmul.mubr.f32.gmra.mrb[0].mxu0 %v389
    %v457 = vpop.f32.mrb[0].mxu0
    %v458 = vadd.f32 %v386, %v457
    %v459 = vpop.f32.mrb[0].mxu0
    %460 = vdwg.mxu0
    %v461 = vld [vmem:[%s13] sm:$0xff]
    %v462 = vld [vmem:[%s13 + $0x8] sm:$0xff]
    %v463 = vld [vmem:[%s13 + $0x10] sm:$0xff]
    %v464 = vld [vmem:[%s13 + $0x18] sm:$0xff]
    %v473 = vcombine.low %v369, %v370
    %v474 = vcombine.low %v371, %v372
    %v476 = vunpack.c.l.s4 1983009808
    %v477 = vunpack.c.0.s8 %v476
    %v478 = vlaneseq
    %v479 = vshrl.u32 %v478, 7
    %v480 = vsub.s32 %v477, %v479
    %v481 = vrot.slane %v473, %v480
    %v483 = vunpack.c.l.s4 1983009808
    %v484 = vunpack.c.0.s8 %v483
    %v485 = vlaneseq
    %v486 = vshrl.u32 %v485, 7
    %v487 = vsub.s32 %v484, %v486
    %v488 = vrot.slane %v474, %v487
    %v489 = vcombine.low %v481, %v488
    %v490 = vcombine.low %v373, %v374
    %v491 = vcombine.low %v375, %v376
    %v493 = vunpack.c.l.s4 1983009808
    %v494 = vunpack.c.0.s8 %v493
    %v495 = vlaneseq
    %v496 = vshrl.u32 %v495, 7
    %v497 = vsub.s32 %v494, %v496
    %v498 = vrot.slane %v490, %v497
    %v500 = vunpack.c.l.s4 1983009808
    %v501 = vunpack.c.0.s8 %v500
    %v502 = vlaneseq
    %v503 = vshrl.u32 %v502, 7
    %v504 = vsub.s32 %v501, %v503
    %v505 = vrot.slane %v491, %v504
    %v506 = vcombine.low %v498, %v505
    %v508 = vcombine.low %v458, %v458
    %v510 = vunpack.c.l.s4 1983009808
    %v511 = vunpack.c.0.s8 %v510
    %v512 = vlaneseq
    %v513 = vshrl.u32 %v512, 7
    %v514 = vsub.s32 %v511, %v513
    %v515 = vrot.slane %v508, %v514
    %v516 = vcombine.low %v515, %v515
    %v518 = vsel %vm103, %v489, 0
    %v520 = vsel %vm103, %v506, 0
    %522 = vmatprep.subr.mxu0 0.0
    %523 = vmatpush1.msra.mxu0 %v461
    %524 = vmatprep.subr.mxu0 0.0
    %525 = vmatpush1.msra.mxu0 %v462
    %526 = vmatprep.subr.mxu0 0.0
    %527 = vmatpush1.msra.mxu0 %v463
    %528 = vmatprep.subr.mxu0 0.0
    %529 = vmatpush1.msra.mxu0 %v464
    %530 = vmatprep.subr.mxu0 0.0
    %531 = vmatpush1.msra.mxu0 0.0
    %532 = vmatprep.subr.mxu0 0.0
    %533 = vmatpush1.msra.mxu0 0.0
    %534 = vmatprep.subr.mxu0 0.0
    %535 = vmatpush1.msra.mxu0 0.0
    %536 = vmatprep.subr.mxu0 0.0
    %537 = vmatpush1.msra.mxu0 0.0
    %538 = vmatprep.subr.mxu0 0.0
    %539 = vmatpush1.msra.mxu0 0.0
    %540 = vmatprep.subr.mxu0 0.0
    %541 = vmatpush1.msra.mxu0 0.0
    %542 = vmatprep.subr.mxu0 0.0
    %543 = vmatpush1.msra.mxu0 0.0
    %544 = vmatprep.subr.mxu0 0.0
    %545 = vmatpush1.msra.mxu0 0.0
    %546 = vmatprep.subr.mxu0 0.0
    %547 = vmatpush1.msra.mxu0 0.0
    %548 = vmatprep.subr.mxu0 0.0
    %549 = vmatpush1.msra.mxu0 0.0
    %550 = vmatprep.subr.mxu0 0.0
    %551 = vmatpush1.msra.mxu0 0.0
    %552 = vmatprep.subr.mxu0 0.0
    %553 = vmatpush1.msra.mxu0 0.0
    %554 = vmatprep.subr.mxu0 0.0
    %555 = vmatpush1.msra.mxu0 0.0
    %556 = vmatprep.subr.mxu0 0.0
    %557 = vmatpush1.msra.mxu0 0.0
    %558 = vmatprep.subr.mxu0 0.0
    %559 = vmatpush1.msra.mxu0 0.0
    %560 = vmatprep.subr.mxu0 0.0
    %561 = vmatpush1.msra.mxu0 0.0
    %562 = vmatprep.subr.mxu0 0.0
    %563 = vmatpush1.msra.mxu0 0.0
    %564 = vmatprep.subr.mxu0 0.0
    %565 = vmatpush1.msra.mxu0 0.0
    %566 = vmatprep.subr.mxu0 0.0
    %567 = vmatpush1.msra.mxu0 0.0
    %568 = vmatprep.subr.mxu0 0.0
    %569 = vmatpush1.msra.mxu0 0.0
    %570 = vmatprep.subr.mxu0 0.0
    %571 = vmatpush1.msra.mxu0 0.0
    %572 = vmatprep.subr.mxu0 0.0
    %573 = vmatpush1.msra.mxu0 0.0
    %574 = vmatprep.subr.mxu0 0.0
    %575 = vmatpush1.msra.mxu0 0.0
    %576 = vmatprep.subr.mxu0 0.0
    %577 = vmatpush1.msra.mxu0 0.0
    %578 = vmatprep.subr.mxu0 0.0
    %579 = vmatpush1.msra.mxu0 0.0
    %580 = vmatprep.subr.mxu0 0.0
    %581 = vmatpush1.msra.mxu0 0.0
    %582 = vmatprep.subr.mxu0 0.0
    %583 = vmatpush1.msra.mxu0 0.0
    %584 = vmatprep.subr.mxu0 0.0
    %585 = vmatpush1.msra.mxu0 0.0
    %586 = vmatprep.mubr.f32.mxu0 0.0
    %587 = vmatmul.mubr.f32.gmra.mrb[0].mxu0 %v518
    %v588 = vpop.f32.mrb[0].mxu0
    %v589 = vadd.f32 %v516, %v588
    %v590 = vpop.f32.mrb[0].mxu0
    %591 = vmatprep.mubr.f32.mxu0 0.0
    %592 = vmatmul.mubr.f32.gmra.mrb[0].mxu0 %v520
    %v593 = vpop.f32.mrb[0].mxu0
    %v594 = vadd.f32 %v516, %v593
    %v595 = vpop.f32.mrb[0].mxu0
    %596 = vdwg.mxu0
    %v599 = vcombine.high %v589, %v589
    %v601 = vunpack.c.l.s4 1983009808
    %v602 = vunpack.c.0.s8 %v601
    %v603 = vlaneseq
    %v604 = vshrl.u32 %v603, 7
    %v605 = vsub.s32 %v602, %v604
    %v606 = vrot.slane %v589, %v605
    %v608 = vunpack.c.l.s4 1983009808
    %v609 = vunpack.c.0.s8 %v608
    %v610 = vlaneseq
    %v611 = vshrl.u32 %v610, 7
    %v612 = vsub.s32 %v609, %v611
    %v613 = vrot.slane %v599, %v612
    %v614 = vcombine.high %v606, %v606
    %v615 = vcombine.high %v613, %v613
    %v616 = vcombine.high %v594, %v594
    %v618 = vunpack.c.l.s4 1983009808
    %v619 = vunpack.c.0.s8 %v618
    %v620 = vlaneseq
    %v621 = vshrl.u32 %v620, 7
    %v622 = vsub.s32 %v619, %v621
    %v623 = vrot.slane %v594, %v622
    %v625 = vunpack.c.l.s4 1983009808
    %v626 = vunpack.c.0.s8 %v625
    %v627 = vlaneseq
    %v628 = vshrl.u32 %v627, 7
    %v629 = vsub.s32 %v626, %v628
    %v630 = vrot.slane %v616, %v629
    %v631 = vcombine.high %v623, %v623
    %v632 = vcombine.high %v630, %v630
    %v641 = vtanh.pop %v606
    %v642 = vtanh.pop %v614
    %v643 = vtanh.pop %v613
    %v644 = vtanh.pop %v615
    %v645 = vtanh.pop %v623
    %v646 = vtanh.pop %v631
    %v647 = vtanh.pop %v630
    %v648 = vtanh.pop %v632
    %v649 = vld [vmem:[%s15] sm:$0x1]
    %v651 = vlaneseq
    %v652 = vshrl.u32 %v651, 7
    %v653 = vsub.s32 0, %v652
    %v654 = vrot.slane %v649, %v653
    %v656 = vmul.f32 %v641, %v654
    %v657 = vmul.f32 %v642, %v654
    %v658 = vmul.f32 %v643, %v654
    %v659 = vmul.f32 %v644, %v654
    %v660 = vmul.f32 %v645, %v654
    %v661 = vmul.f32 %v646, %v654
    %v662 = vmul.f32 %v647, %v654
    %v663 = vmul.f32 %v648, %v654
    %v664 = vsel %vm367, %v656, 0.0
    %665 = vadd.xlane.f32.xlu0 %v664
    %v666 = vpop.xlane.xlu0 %665
    %v667 = vsel %vm367, %v657, 0.0
    %668 = vadd.xlane.f32.xlu0 %v667
    %v669 = vpop.xlane.xlu0 %668
    %v670 = vsel %vm367, %v658, 0.0
    %671 = vadd.xlane.f32.xlu0 %v670
    %v672 = vpop.xlane.xlu0 %671
    %v673 = vsel %vm367, %v659, 0.0
    %674 = vadd.xlane.f32.xlu0 %v673
    %v675 = vpop.xlane.xlu0 %674
    %v676 = vsel %vm367, %v660, 0.0
    %677 = vadd.xlane.f32.xlu0 %v676
    %v678 = vpop.xlane.xlu0 %677
    %v679 = vsel %vm367, %v661, 0.0
    %680 = vadd.xlane.f32.xlu0 %v679
    %v681 = vpop.xlane.xlu0 %680
    %v682 = vsel %vm367, %v662, 0.0
    %683 = vadd.xlane.f32.xlu0 %v682
    %v684 = vpop.xlane.xlu0 %683
    %v685 = vsel %vm367, %v663, 0.0
    %686 = vadd.xlane.f32.xlu0 %v685
    %v687 = vpop.xlane.xlu0 %686
    %v688 = vld [vmem:[#allocation2] sm:$0x1]
    %v690 = vlaneseq
    %v691 = vshrl.u32 %v690, 7
    %v692 = vsub.s32 0, %v691
    %v693 = vrot.slane %v688, %v692
    %v695 = vadd.f32 %v666, %v693
    %v696 = vadd.f32 %v669, %v693
    %v697 = vadd.f32 %v672, %v693
    %v698 = vadd.f32 %v675, %v693
    %v699 = vadd.f32 %v678, %v693
    %v700 = vadd.f32 %v681, %v693
    %v701 = vadd.f32 %v684, %v693
    %v702 = vadd.f32 %v687, %v693
    %v703 = vld [vmem:[%s4] sm:$0x3]
    %v704 = vld [vmem:[%s4 + $0x2] sm:$0x3]
    %v705 = vld [vmem:[%s4 + $0x4] sm:$0x3]
    %v706 = vld [vmem:[%s4 + $0x6] sm:$0x3]
    %v707 = vld [vmem:[%s4 + $0x8] sm:$0x3]
    %v708 = vld [vmem:[%s4 + $0xa] sm:$0x3]
    %v709 = vld [vmem:[%s4 + $0xc] sm:$0x3]
    %v710 = vld [vmem:[%s4 + $0xe] sm:$0x3]
    %vm711 = vcmp.ne.s32.totalorder %v703, 0
    %vm712 = vcmp.ne.s32.totalorder %v704, 0
    %vm713 = vcmp.ne.s32.totalorder %v705, 0
    %vm714 = vcmp.ne.s32.totalorder %v706, 0
    %vm715 = vcmp.ne.s32.totalorder %v707, 0
    %vm716 = vcmp.ne.s32.totalorder %v708, 0
    %vm717 = vcmp.ne.s32.totalorder %v709, 0
    %vm718 = vcmp.ne.s32.totalorder %v710, 0
    %v719 = vsel %vm711, -1e+12, %v695
    %v720 = vsel %vm712, -1e+12, %v696
    %v721 = vsel %vm713, -1e+12, %v697
    %v722 = vsel %vm714, -1e+12, %v698
    %v723 = vsel %vm715, -1e+12, %v699
    %v724 = vsel %vm716, -1e+12, %v700
    %v725 = vsel %vm717, -1e+12, %v701
    %v726 = vsel %vm718, -1e+12, %v702
    %vm727 = vcmask 1024
    %v728 = vsel %vm727, %v719, -inf
    %v729 = vsel %vm727, %v720, -inf
    %v730 = vsel %vm727, %v721, -inf
    %v731 = vsel %vm727, %v722, -inf
    %v732 = vsel %vm727, %v723, -inf
    %v733 = vmax.f32 %v728, %v732
    %v734 = vsel %vm727, %v724, -inf
    %v735 = vmax.f32 %v729, %v734
    %v736 = vsel %vm727, %v725, -inf
    %v737 = vmax.f32 %v730, %v736
    %v738 = vsel %vm727, %v726, -inf
    %v739 = vmax.f32 %v731, %v738
    %v740 = vmax.f32 %v733, %v735
    %v741 = vmax.f32 %v737, %v739
    %v742 = vmax.f32 %v740, %v741
    %v743 = vsub.f32 %v719, %v742
    %v744 = vsub.f32 %v720, %v742
    %v745 = vsub.f32 %v721, %v742
    %v746 = vsub.f32 %v722, %v742
    %v747 = vsub.f32 %v723, %v742
    %v748 = vsub.f32 %v724, %v742
    %v749 = vsub.f32 %v725, %v742
    %v750 = vsub.f32 %v726, %v742
    %v751 = vmul.f32 %v743, 1.442695
    %v752 = vpow.pop %v751
    %v753 = vmul.f32 %v744, 1.442695
    %v754 = vpow.pop %v753
    %v755 = vmul.f32 %v745, 1.442695
    %v756 = vpow.pop %v755
    %v757 = vmul.f32 %v746, 1.442695
    %v758 = vpow.pop %v757
    %v759 = vmul.f32 %v747, 1.442695
    %v760 = vpow.pop %v759
    %v761 = vmul.f32 %v748, 1.442695
    %v762 = vpow.pop %v761
    %v763 = vmul.f32 %v749, 1.442695
    %v764 = vpow.pop %v763
    %v765 = vmul.f32 %v750, 1.442695
    %v766 = vpow.pop %v765
    %v767 = vsel %vm727, %v752, 0.0
    %v768 = vsel %vm727, %v754, 0.0
    %v769 = vadd.f32 %v767, %v768
    %v770 = vsel %vm727, %v756, 0.0
    %v771 = vadd.f32 %v769, %v770
    %v772 = vsel %vm727, %v758, 0.0
    %v773 = vadd.f32 %v771, %v772
    %v774 = vsel %vm727, %v760, 0.0
    %v775 = vadd.f32 %v773, %v774
    %v776 = vsel %vm727, %v762, 0.0
    %v777 = vadd.f32 %v775, %v776
    %v778 = vsel %vm727, %v764, 0.0
    %v779 = vadd.f32 %v777, %v778
    %v780 = vsel %vm727, %v766, 0.0
    %v781 = vadd.f32 %v779, %v780
    %v782 = vrcp.pop %v781
    %v783 = vmul.f32 %v752, %v782
    %v784 = vmul.f32 %v754, %v782
    %v785 = vmul.f32 %v756, %v782
    %v786 = vmul.f32 %v758, %v782
    %v787 = vmul.f32 %v760, %v782
    %v788 = vmul.f32 %v762, %v782
    %v789 = vmul.f32 %v764, %v782
    %v790 = vmul.f32 %v766, %v782
    %792 = vset.pattern.permute.xlu0 0
    %793 = vperm.xlu0 %792, %v783
    %v794 = vpop.permute.xlu0 %793
    %797 = vset.pattern.permute.xlu0 0
    %798 = vperm.xlu0 %797, %v784
    %v799 = vpop.permute.xlu0 %798
    %802 = vset.pattern.permute.xlu0 0
    %803 = vperm.xlu0 %802, %v785
    %v804 = vpop.permute.xlu0 %803
    %807 = vset.pattern.permute.xlu0 0
    %808 = vperm.xlu0 %807, %v786
    %v809 = vpop.permute.xlu0 %808
    %812 = vset.pattern.permute.xlu0 0
    %813 = vperm.xlu0 %812, %v787
    %v814 = vpop.permute.xlu0 %813
    %817 = vset.pattern.permute.xlu0 0
    %818 = vperm.xlu0 %817, %v788
    %v819 = vpop.permute.xlu0 %818
    %822 = vset.pattern.permute.xlu0 0
    %823 = vperm.xlu0 %822, %v789
    %v824 = vpop.permute.xlu0 %823
    %827 = vset.pattern.permute.xlu0 0
    %828 = vperm.xlu0 %827, %v790
    %v829 = vpop.permute.xlu0 %828
    %v831 = vmul.f32 %v794, %v369
    %v832 = vmul.f32 %v799, %v370
    %v833 = vmul.f32 %v804, %v371
    %v834 = vmul.f32 %v809, %v372
    %v835 = vmul.f32 %v814, %v373
    %v836 = vmul.f32 %v819, %v374
    %v837 = vmul.f32 %v824, %v375
    %v838 = vmul.f32 %v829, %v376
    %v839 = vsel %vm367, %v831, 0.0
    %v840 = vsel %vm367, %v832, 0.0
    %v841 = vadd.f32 %v839, %v840
    %v842 = vsel %vm367, %v833, 0.0
    %v843 = vadd.f32 %v841, %v842
    %v844 = vsel %vm367, %v834, 0.0
    %v845 = vadd.f32 %v843, %v844
    %v846 = vsel %vm367, %v835, 0.0
    %v847 = vadd.f32 %v845, %v846
    %v848 = vsel %vm367, %v836, 0.0
    %v849 = vadd.f32 %v847, %v848
    %v850 = vsel %vm367, %v837, 0.0
    %v851 = vadd.f32 %v849, %v850
    %v852 = vsel %vm367, %v838, 0.0
    %v853 = vadd.f32 %v851, %v852
    %854 = vst.msk [vmem:[#allocation8] sm:$0x3] %vm367, %v853
    %v855 = vld [vmem:[%s5] sm:$0x7f]
    %v856 = vld [vmem:[%s5 + $0x8] sm:$0x7f]
    %v857 = vld [vmem:[%s17] sm:$0xff]
    %v858 = vld [vmem:[%s17 + $0x8] sm:$0xff]
    %v859 = vld [vmem:[%s17 + $0x10] sm:$0xff]
    %v860 = vld [vmem:[%s17 + $0x18] sm:$0xff]
    %v861 = vld [vmem:[%s18] sm:$0xff]
    %v862 = vld [vmem:[%s18 + $0x8] sm:$0xff]
    %v863 = vld [vmem:[%s18 + $0x10] sm:$0xff]
    %v864 = vld [vmem:[%s18 + $0x18] sm:$0xff]
    %v866 = vsel %vm103, %v853, 0
    %868 = vmatprep.subr.mxu0 0.0
    %869 = vmatpush1.msra.mxu0 %v861
    %870 = vmatprep.subr.mxu0 0.0
    %871 = vmatpush1.msra.mxu0 %v862
    %872 = vmatprep.subr.mxu0 0.0
    %873 = vmatpush1.msra.mxu0 %v863
    %874 = vmatprep.subr.mxu0 0.0
    %875 = vmatpush1.msra.mxu0 %v864
    %876 = vmatprep.subr.mxu0 0.0
    %877 = vmatpush1.msra.mxu0 0.0
    %878 = vmatprep.subr.mxu0 0.0
    %879 = vmatpush1.msra.mxu0 0.0
    %880 = vmatprep.subr.mxu0 0.0
    %881 = vmatpush1.msra.mxu0 0.0
    %882 = vmatprep.subr.mxu0 0.0
    %883 = vmatpush1.msra.mxu0 0.0
    %884 = vmatprep.subr.mxu0 0.0
    %885 = vmatpush1.msra.mxu0 0.0
    %886 = vmatprep.subr.mxu0 0.0
    %887 = vmatpush1.msra.mxu0 0.0
    %888 = vmatprep.subr.mxu0 0.0
    %889 = vmatpush1.msra.mxu0 0.0
    %890 = vmatprep.subr.mxu0 0.0
    %891 = vmatpush1.msra.mxu0 0.0
    %892 = vmatprep.subr.mxu0 0.0
    %893 = vmatpush1.msra.mxu0 0.0
    %894 = vmatprep.subr.mxu0 0.0
    %895 = vmatpush1.msra.mxu0 0.0
    %896 = vmatprep.subr.mxu0 0.0
    %897 = vmatpush1.msra.mxu0 0.0
    %898 = vmatprep.subr.mxu0 0.0
    %899 = vmatpush1.msra.mxu0 0.0
    %900 = vmatprep.subr.mxu0 0.0
    %901 = vmatpush1.msra.mxu0 0.0
    %902 = vmatprep.subr.mxu0 0.0
    %903 = vmatpush1.msra.mxu0 0.0
    %904 = vmatprep.subr.mxu0 0.0
    %905 = vmatpush1.msra.mxu0 0.0
    %906 = vmatprep.subr.mxu0 0.0
    %907 = vmatpush1.msra.mxu0 0.0
    %908 = vmatprep.subr.mxu0 0.0
    %909 = vmatpush1.msra.mxu0 0.0
    %910 = vmatprep.subr.mxu0 0.0
    %911 = vmatpush1.msra.mxu0 0.0
    %912 = vmatprep.subr.mxu0 0.0
    %913 = vmatpush1.msra.mxu0 0.0
    %914 = vmatprep.subr.mxu0 0.0
    %915 = vmatpush1.msra.mxu0 0.0
    %916 = vmatprep.subr.mxu0 0.0
    %917 = vmatpush1.msra.mxu0 0.0
    %918 = vmatprep.subr.mxu0 0.0
    %919 = vmatpush1.msra.mxu0 0.0
    %920 = vmatprep.subr.mxu0 0.0
    %921 = vmatpush1.msra.mxu0 0.0
    %922 = vmatprep.subr.mxu0 0.0
    %923 = vmatpush1.msra.mxu0 0.0
    %924 = vmatprep.subr.mxu0 0.0
    %925 = vmatpush1.msra.mxu0 0.0
    %926 = vmatprep.subr.mxu0 0.0
    %927 = vmatpush1.msra.mxu0 0.0
    %928 = vmatprep.subr.mxu0 0.0
    %929 = vmatpush1.msra.mxu0 0.0
    %930 = vmatprep.subr.mxu0 0.0
    %931 = vmatpush1.msra.mxu0 0.0
    %932 = vmatprep.mubr.f32.mxu0 0.0
    %933 = vmatmul.mubr.f32.gmra.mrb[0].mxu0 %v866
    %v934 = vpop.f32.mrb[0].mxu0
    %v935 = vadd.f32 0.0, %v934
    %v936 = vpop.f32.mrb[0].mxu0
    %937 = vdwg.mxu0
    %938 = vmatprep.subr.mxu0 0.0
    %939 = vmatpush1.msra.mxu0 %v857
    %940 = vmatprep.subr.mxu0 0.0
    %941 = vmatpush1.msra.mxu0 %v858
    %942 = vmatprep.subr.mxu0 0.0
    %943 = vmatpush1.msra.mxu0 %v859
    %944 = vmatprep.subr.mxu0 0.0
    %945 = vmatpush1.msra.mxu0 %v860
    %946 = vmatprep.subr.mxu0 0.0
    %947 = vmatpush1.msra.mxu0 0.0
    %948 = vmatprep.subr.mxu0 0.0
    %949 = vmatpush1.msra.mxu0 0.0
    %950 = vmatprep.subr.mxu0 0.0
    %951 = vmatpush1.msra.mxu0 0.0
    %952 = vmatprep.subr.mxu0 0.0
    %953 = vmatpush1.msra.mxu0 0.0
    %954 = vmatprep.subr.mxu0 0.0
    %955 = vmatpush1.msra.mxu0 0.0
    %956 = vmatprep.subr.mxu0 0.0
    %957 = vmatpush1.msra.mxu0 0.0
    %958 = vmatprep.subr.mxu0 0.0
    %959 = vmatpush1.msra.mxu0 0.0
    %960 = vmatprep.subr.mxu0 0.0
    %961 = vmatpush1.msra.mxu0 0.0
    %962 = vmatprep.subr.mxu0 0.0
    %963 = vmatpush1.msra.mxu0 0.0
    %964 = vmatprep.subr.mxu0 0.0
    %965 = vmatpush1.msra.mxu0 0.0
    %966 = vmatprep.subr.mxu0 0.0
    %967 = vmatpush1.msra.mxu0 0.0
    %968 = vmatprep.subr.mxu0 0.0
    %969 = vmatpush1.msra.mxu0 0.0
    %970 = vmatprep.subr.mxu0 0.0
    %971 = vmatpush1.msra.mxu0 0.0
    %972 = vmatprep.subr.mxu0 0.0
    %973 = vmatpush1.msra.mxu0 0.0
    %974 = vmatprep.subr.mxu0 0.0
    %975 = vmatpush1.msra.mxu0 0.0
    %976 = vmatprep.subr.mxu0 0.0
    %977 = vmatpush1.msra.mxu0 0.0
    %978 = vmatprep.subr.mxu0 0.0
    %979 = vmatpush1.msra.mxu0 0.0
    %980 = vmatprep.subr.mxu0 0.0
    %981 = vmatpush1.msra.mxu0 0.0
    %982 = vmatprep.subr.mxu0 0.0
    %983 = vmatpush1.msra.mxu0 0.0
    %984 = vmatprep.subr.mxu0 0.0
    %985 = vmatpush1.msra.mxu0 0.0
    %986 = vmatprep.subr.mxu0 0.0
    %987 = vmatpush1.msra.mxu0 0.0
    %988 = vmatprep.subr.mxu0 0.0
    %989 = vmatpush1.msra.mxu0 0.0
    %990 = vmatprep.subr.mxu0 0.0
    %991 = vmatpush1.msra.mxu0 0.0
    %992 = vmatprep.subr.mxu0 0.0
    %993 = vmatpush1.msra.mxu0 0.0
    %994 = vmatprep.subr.mxu0 0.0
    %995 = vmatpush1.msra.mxu0 0.0
    %996 = vmatprep.subr.mxu0 0.0
    %997 = vmatpush1.msra.mxu0 0.0
    %998 = vmatprep.subr.mxu0 0.0
    %999 = vmatpush1.msra.mxu0 0.0
    %1000 = vmatprep.subr.mxu0 0.0
    %1001 = vmatpush1.msra.mxu0 0.0
    %1002 = vmatprep.mubr.f32.mxu0 0.0
    %1003 = vmatmul.mubr.f32.gmra.mrb[0].mxu0 %v389
    %v1004 = vpop.f32.mrb[0].mxu0
    %v1005 = vadd.f32 %v935, %v1004
    %v1006 = vpop.f32.mrb[0].mxu0
    %1007 = vdwg.mxu0
    %v1008 = vld [vmem:[%s20] sm:$0x1]
    %v1010 = vlaneseq
    %v1011 = vshrl.u32 %v1010, 7
    %v1012 = vsub.s32 0, %v1011
    %v1013 = vrot.slane %v1008, %v1012
    %v1015 = vadd.f32 %v1005, %v1013
    %v1016 = vld [vmem:[%s19] sm:$0xff]
    %v1017 = vld [vmem:[%s19 + $0x8] sm:$0xff]
    %v1018 = vld [vmem:[%s19 + $0x10] sm:$0xff]
    %v1019 = vld [vmem:[%s19 + $0x18] sm:$0xff]
    %v1022 = vunpack.c.l.s4 1966171168
    %v1023 = vunpack.c.0.s8 %v1022
    %v1024 = vlaneseq
    %v1025 = vshrl.u32 %v1024, 7
    %v1026 = vsub.s32 %v1023, %v1025
    %v1027 = vrot.slane %v1015, %v1026
    %v1028 = vcombine.high %v1027, %v1027
    %v1030 = vunpack.c.l.s4 1966171168
    %v1031 = vunpack.c.0.s8 %v1030
    %v1032 = vlaneseq
    %v1033 = vshrl.u32 %v1032, 7
    %v1034 = vsub.s32 %v1031, %v1033
    %v1035 = vrot.slane %v1027, %v1034
    %v1037 = vunpack.c.l.s4 1966171168
    %v1038 = vunpack.c.0.s8 %v1037
    %v1039 = vlaneseq
    %v1040 = vshrl.u32 %v1039, 7
    %v1041 = vsub.s32 %v1038, %v1040
    %v1042 = vrot.slane %v1028, %v1041
    %v1043 = vlaneseq
    %v1044 = vshrl.u32 %v1043, 7
    %v1045 = vsub.s32 0, %v1044
    %v1046 = vrot.slane %v1035, %v1045
    %v1047 = vlaneseq
    %v1048 = vshrl.u32 %v1047, 7
    %v1049 = vsub.s32 0, %v1048
    %v1050 = vrot.slane %v1042, %v1049
    %v1053 = vcombine.high %v855, %v855
    %v1055 = vunpack.c.l.s4 1966171168
    %v1056 = vunpack.c.0.s8 %v1055
    %v1057 = vlaneseq
    %v1058 = vshrl.u32 %v1057, 7
    %v1059 = vsub.s32 %v1056, %v1058
    %v1060 = vrot.slane %v855, %v1059
    %v1062 = vunpack.c.l.s4 1966171168
    %v1063 = vunpack.c.0.s8 %v1062
    %v1064 = vlaneseq
    %v1065 = vshrl.u32 %v1064, 7
    %v1066 = vsub.s32 %v1063, %v1065
    %v1067 = vrot.slane %v1053, %v1066
    %v1068 = vcombine.high %v1060, %v1060
    %v1069 = vcombine.high %v1067, %v1067
    %v1071 = vunpack.c.l.s4 1966171168
    %v1072 = vunpack.c.0.s8 %v1071
    %v1073 = vlaneseq
    %v1074 = vshrl.u32 %v1073, 7
    %v1075 = vsub.s32 %v1072, %v1074
    %v1076 = vrot.slane %v1060, %v1075
    %v1078 = vunpack.c.l.s4 1966171168
    %v1079 = vunpack.c.0.s8 %v1078
    %v1080 = vlaneseq
    %v1081 = vshrl.u32 %v1080, 7
    %v1082 = vsub.s32 %v1079, %v1081
    %v1083 = vrot.slane %v1067, %v1082
    %v1085 = vunpack.c.l.s4 1966171168
    %v1086 = vunpack.c.0.s8 %v1085
    %v1087 = vlaneseq
    %v1088 = vshrl.u32 %v1087, 7
    %v1089 = vsub.s32 %v1086, %v1088
    %v1090 = vrot.slane %v1068, %v1089
    %v1092 = vunpack.c.l.s4 1966171168
    %v1093 = vunpack.c.0.s8 %v1092
    %v1094 = vlaneseq
    %v1095 = vshrl.u32 %v1094, 7
    %v1096 = vsub.s32 %v1093, %v1095
    %v1097 = vrot.slane %v1069, %v1096
    %v1098 = vcombine.high %v1076, %v1076
    %v1099 = vcombine.high %v1083, %v1083
    %v1100 = vcombine.high %v1090, %v1090
    %v1101 = vcombine.high %v856, %v856
    %v1103 = vunpack.c.l.s4 1966171168
    %v1104 = vunpack.c.0.s8 %v1103
    %v1105 = vlaneseq
    %v1106 = vshrl.u32 %v1105, 7
    %v1107 = vsub.s32 %v1104, %v1106
    %v1108 = vrot.slane %v856, %v1107
    %v1110 = vunpack.c.l.s4 1966171168
    %v1111 = vunpack.c.0.s8 %v1110
    %v1112 = vlaneseq
    %v1113 = vshrl.u32 %v1112, 7
    %v1114 = vsub.s32 %v1111, %v1113
    %v1115 = vrot.slane %v1101, %v1114
    %v1116 = vcombine.high %v1108, %v1108
    %v1117 = vcombine.high %v1115, %v1115
    %v1119 = vunpack.c.l.s4 1966171168
    %v1120 = vunpack.c.0.s8 %v1119
    %v1121 = vlaneseq
    %v1122 = vshrl.u32 %v1121, 7
    %v1123 = vsub.s32 %v1120, %v1122
    %v1124 = vrot.slane %v1108, %v1123
    %v1126 = vunpack.c.l.s4 1966171168
    %v1127 = vunpack.c.0.s8 %v1126
    %v1128 = vlaneseq
    %v1129 = vshrl.u32 %v1128, 7
    %v1130 = vsub.s32 %v1127, %v1129
    %v1131 = vrot.slane %v1115, %v1130
    %v1133 = vunpack.c.l.s4 1966171168
    %v1134 = vunpack.c.0.s8 %v1133
    %v1135 = vlaneseq
    %v1136 = vshrl.u32 %v1135, 7
    %v1137 = vsub.s32 %v1134, %v1136
    %v1138 = vrot.slane %v1116, %v1137
    %v1140 = vunpack.c.l.s4 1966171168
    %v1141 = vunpack.c.0.s8 %v1140
    %v1142 = vlaneseq
    %v1143 = vshrl.u32 %v1142, 7
    %v1144 = vsub.s32 %v1141, %v1143
    %v1145 = vrot.slane %v1117, %v1144
    %v1146 = vcombine.high %v1124, %v1124
    %v1147 = vcombine.high %v1131, %v1131
    %v1148 = vcombine.high %v1138, %v1138
    %v1149 = vcombine.high %v1046, %v1046
    %v1151 = vunpack.c.l.s4 1966171168
    %v1152 = vunpack.c.0.s8 %v1151
    %v1153 = vlaneseq
    %v1154 = vshrl.u32 %v1153, 7
    %v1155 = vsub.s32 %v1152, %v1154
    %v1156 = vrot.slane %v1046, %v1155
    %v1158 = vunpack.c.l.s4 1966171168
    %v1159 = vunpack.c.0.s8 %v1158
    %v1160 = vlaneseq
    %v1161 = vshrl.u32 %v1160, 7
    %v1162 = vsub.s32 %v1159, %v1161
    %v1163 = vrot.slane %v1149, %v1162
    %v1164 = vcombine.high %v1156, %v1156
    %v1165 = vcombine.high %v1163, %v1163
    %v1167 = vunpack.c.l.s4 1966171168
    %v1168 = vunpack.c.0.s8 %v1167
    %v1169 = vlaneseq
    %v1170 = vshrl.u32 %v1169, 7
    %v1171 = vsub.s32 %v1168, %v1170
    %v1172 = vrot.slane %v1156, %v1171
    %v1174 = vunpack.c.l.s4 1966171168
    %v1175 = vunpack.c.0.s8 %v1174
    %v1176 = vlaneseq
    %v1177 = vshrl.u32 %v1176, 7
    %v1178 = vsub.s32 %v1175, %v1177
    %v1179 = vrot.slane %v1163, %v1178
    %v1181 = vunpack.c.l.s4 1966171168
    %v1182 = vunpack.c.0.s8 %v1181
    %v1183 = vlaneseq
    %v1184 = vshrl.u32 %v1183, 7
    %v1185 = vsub.s32 %v1182, %v1184
    %v1186 = vrot.slane %v1164, %v1185
    %v1188 = vunpack.c.l.s4 1966171168
    %v1189 = vunpack.c.0.s8 %v1188
    %v1190 = vlaneseq
    %v1191 = vshrl.u32 %v1190, 7
    %v1192 = vsub.s32 %v1189, %v1191
    %v1193 = vrot.slane %v1165, %v1192
    %v1194 = vcombine.high %v1172, %v1172
    %v1195 = vcombine.high %v1179, %v1179
    %v1196 = vcombine.high %v1186, %v1186
    %v1197 = vcombine.high %v1050, %v1050
    %v1199 = vunpack.c.l.s4 1966171168
    %v1200 = vunpack.c.0.s8 %v1199
    %v1201 = vlaneseq
    %v1202 = vshrl.u32 %v1201, 7
    %v1203 = vsub.s32 %v1200, %v1202
    %v1204 = vrot.slane %v1050, %v1203
    %v1206 = vunpack.c.l.s4 1966171168
    %v1207 = vunpack.c.0.s8 %v1206
    %v1208 = vlaneseq
    %v1209 = vshrl.u32 %v1208, 7
    %v1210 = vsub.s32 %v1207, %v1209
    %v1211 = vrot.slane %v1197, %v1210
    %v1212 = vcombine.high %v1204, %v1204
    %v1213 = vcombine.high %v1211, %v1211
    %v1215 = vunpack.c.l.s4 1966171168
    %v1216 = vunpack.c.0.s8 %v1215
    %v1217 = vlaneseq
    %v1218 = vshrl.u32 %v1217, 7
    %v1219 = vsub.s32 %v1216, %v1218
    %v1220 = vrot.slane %v1204, %v1219
    %v1222 = vunpack.c.l.s4 1966171168
    %v1223 = vunpack.c.0.s8 %v1222
    %v1224 = vlaneseq
    %v1225 = vshrl.u32 %v1224, 7
    %v1226 = vsub.s32 %v1223, %v1225
    %v1227 = vrot.slane %v1211, %v1226
    %v1229 = vunpack.c.l.s4 1966171168
    %v1230 = vunpack.c.0.s8 %v1229
    %v1231 = vlaneseq
    %v1232 = vshrl.u32 %v1231, 7
    %v1233 = vsub.s32 %v1230, %v1232
    %v1234 = vrot.slane %v1212, %v1233
    %v1236 = vunpack.c.l.s4 1966171168
    %v1237 = vunpack.c.0.s8 %v1236
    %v1238 = vlaneseq
    %v1239 = vshrl.u32 %v1238, 7
    %v1240 = vsub.s32 %v1237, %v1239
    %v1241 = vrot.slane %v1213, %v1240
    %v1242 = vcombine.high %v1220, %v1220
    %v1243 = vcombine.high %v1227, %v1227
    %v1244 = vcombine.high %v1234, %v1234
    %v1245 = vcombine.low %v1076, %v1090
    %v1246 = vcombine.low %v1098, %v1100
    %v1247 = vcombine.low %v1083, %v1097
    %v1248 = vcombine.low %v1099, %v1124
    %v1250 = vunpack.c.l.s4 1966171168
    %v1251 = vunpack.c.0.s8 %v1250
    %v1252 = vlaneseq
    %v1253 = vshrl.u32 %v1252, 7
    %v1254 = vsub.s32 %v1251, %v1253
    %v1255 = vrot.slane %v1245, %v1254
    %v1257 = vunpack.c.l.s4 1966171168
    %v1258 = vunpack.c.0.s8 %v1257
    %v1259 = vlaneseq
    %v1260 = vshrl.u32 %v1259, 7
    %v1261 = vsub.s32 %v1258, %v1260
    %v1262 = vrot.slane %v1246, %v1261
    %v1264 = vunpack.c.l.s4 1966171168
    %v1265 = vunpack.c.0.s8 %v1264
    %v1266 = vlaneseq
    %v1267 = vshrl.u32 %v1266, 7
    %v1268 = vsub.s32 %v1265, %v1267
    %v1269 = vrot.slane %v1247, %v1268
    %v1271 = vunpack.c.l.s4 1966171168
    %v1272 = vunpack.c.0.s8 %v1271
    %v1273 = vlaneseq
    %v1274 = vshrl.u32 %v1273, 7
    %v1275 = vsub.s32 %v1272, %v1274
    %v1276 = vrot.slane %v1248, %v1275
    %v1277 = vcombine.low %v1255, %v1262
    %v1278 = vcombine.low %v1269, %v1276
    %v1280 = vunpack.c.l.s4 1966171168
    %v1281 = vunpack.c.0.s8 %v1280
    %v1282 = vlaneseq
    %v1283 = vshrl.u32 %v1282, 7
    %v1284 = vsub.s32 %v1281, %v1283
    %v1285 = vrot.slane %v1277, %v1284
    %v1287 = vunpack.c.l.s4 1966171168
    %v1288 = vunpack.c.0.s8 %v1287
    %v1289 = vlaneseq
    %v1290 = vshrl.u32 %v1289, 7
    %v1291 = vsub.s32 %v1288, %v1290
    %v1292 = vrot.slane %v1278, %v1291
    %v1293 = vcombine.low %v1285, %v1292
    %v1294 = vcombine.low %v1138, %v1146
    %v1295 = vcombine.low %v1148, %v1131
    %v1296 = vcombine.low %v1145, %v1147
    %v1298 = vunpack.c.l.s4 1966171168
    %v1299 = vunpack.c.0.s8 %v1298
    %v1300 = vlaneseq
    %v1301 = vshrl.u32 %v1300, 7
    %v1302 = vsub.s32 %v1299, %v1301
    %v1303 = vrot.slane %v1294, %v1302
    %v1305 = vunpack.c.l.s4 1966171168
    %v1306 = vunpack.c.0.s8 %v1305
    %v1307 = vlaneseq
    %v1308 = vshrl.u32 %v1307, 7
    %v1309 = vsub.s32 %v1306, %v1308
    %v1310 = vrot.slane %v1295, %v1309
    %v1312 = vunpack.c.l.s4 1966171168
    %v1313 = vunpack.c.0.s8 %v1312
    %v1314 = vlaneseq
    %v1315 = vshrl.u32 %v1314, 7
    %v1316 = vsub.s32 %v1313, %v1315
    %v1317 = vrot.slane %v1296, %v1316
    %v1318 = vcombine.low %v1303, %v1310
    %v1320 = vunpack.c.l.s4 1966171168
    %v1321 = vunpack.c.0.s8 %v1320
    %v1322 = vlaneseq
    %v1323 = vshrl.u32 %v1322, 7
    %v1324 = vsub.s32 %v1321, %v1323
    %v1325 = vrot.slane %v1318, %v1324
    %v1327 = vunpack.c.l.s4 1966171168
    %v1328 = vunpack.c.0.s8 %v1327
    %v1329 = vlaneseq
    %v1330 = vshrl.u32 %v1329, 7
    %v1331 = vsub.s32 %v1328, %v1330
    %v1332 = vrot.slane %v1317, %v1331
    %v1333 = vcombine.low %v1325, %v1332
    %v1334 = vcombine.low %v1172, %v1186
    %v1335 = vcombine.low %v1194, %v1196
    %v1336 = vcombine.low %v1179, %v1193
    %v1337 = vcombine.low %v1195, %v1220
    %v1339 = vunpack.c.l.s4 1966171168
    %v1340 = vunpack.c.0.s8 %v1339
    %v1341 = vlaneseq
    %v1342 = vshrl.u32 %v1341, 7
    %v1343 = vsub.s32 %v1340, %v1342
    %v1344 = vrot.slane %v1334, %v1343
    %v1346 = vunpack.c.l.s4 1966171168
    %v1347 = vunpack.c.0.s8 %v1346
    %v1348 = vlaneseq
    %v1349 = vshrl.u32 %v1348, 7
    %v1350 = vsub.s32 %v1347, %v1349
    %v1351 = vrot.slane %v1335, %v1350
    %v1353 = vunpack.c.l.s4 1966171168
    %v1354 = vunpack.c.0.s8 %v1353
    %v1355 = vlaneseq
    %v1356 = vshrl.u32 %v1355, 7
    %v1357 = vsub.s32 %v1354, %v1356
    %v1358 = vrot.slane %v1336, %v1357
    %v1360 = vunpack.c.l.s4 1966171168
    %v1361 = vunpack.c.0.s8 %v1360
    %v1362 = vlaneseq
    %v1363 = vshrl.u32 %v1362, 7
    %v1364 = vsub.s32 %v1361, %v1363
    %v1365 = vrot.slane %v1337, %v1364
    %v1366 = vcombine.low %v1344, %v1351
    %v1367 = vcombine.low %v1358, %v1365
    %v1369 = vunpack.c.l.s4 1966171168
    %v1370 = vunpack.c.0.s8 %v1369
    %v1371 = vlaneseq
    %v1372 = vshrl.u32 %v1371, 7
    %v1373 = vsub.s32 %v1370, %v1372
    %v1374 = vrot.slane %v1366, %v1373
    %v1376 = vunpack.c.l.s4 1966171168
    %v1377 = vunpack.c.0.s8 %v1376
    %v1378 = vlaneseq
    %v1379 = vshrl.u32 %v1378, 7
    %v1380 = vsub.s32 %v1377, %v1379
    %v1381 = vrot.slane %v1367, %v1380
    %v1382 = vcombine.low %v1374, %v1381
    %v1383 = vcombine.low %v1234, %v1242
    %v1384 = vcombine.low %v1244, %v1227
    %v1385 = vcombine.low %v1241, %v1243
    %v1387 = vunpack.c.l.s4 1966171168
    %v1388 = vunpack.c.0.s8 %v1387
    %v1389 = vlaneseq
    %v1390 = vshrl.u32 %v1389, 7
    %v1391 = vsub.s32 %v1388, %v1390
    %v1392 = vrot.slane %v1383, %v1391
    %v1394 = vunpack.c.l.s4 1966171168
    %v1395 = vunpack.c.0.s8 %v1394
    %v1396 = vlaneseq
    %v1397 = vshrl.u32 %v1396, 7
    %v1398 = vsub.s32 %v1395, %v1397
    %v1399 = vrot.slane %v1384, %v1398
    %v1401 = vunpack.c.l.s4 1966171168
    %v1402 = vunpack.c.0.s8 %v1401
    %v1403 = vlaneseq
    %v1404 = vshrl.u32 %v1403, 7
    %v1405 = vsub.s32 %v1402, %v1404
    %v1406 = vrot.slane %v1385, %v1405
    %v1407 = vcombine.low %v1392, %v1399
    %v1409 = vunpack.c.l.s4 1966171168
    %v1410 = vunpack.c.0.s8 %v1409
    %v1411 = vlaneseq
    %v1412 = vshrl.u32 %v1411, 7
    %v1413 = vsub.s32 %v1410, %v1412
    %v1414 = vrot.slane %v1407, %v1413
    %v1416 = vunpack.c.l.s4 1966171168
    %v1417 = vunpack.c.0.s8 %v1416
    %v1418 = vlaneseq
    %v1419 = vshrl.u32 %v1418, 7
    %v1420 = vsub.s32 %v1417, %v1419
    %v1421 = vrot.slane %v1406, %v1420
    %v1422 = vcombine.low %v1414, %v1421
    %v1425 = vsel %vm103, %v1293, 0
    %v1427 = vsel %vm103, %v1333, 0
    %1429 = vmatprep.subr.mxu0 0.0
    %1430 = vmatpush1.msra.mxu0 %v1016
    %1431 = vmatprep.subr.mxu0 0.0
    %1432 = vmatpush1.msra.mxu0 %v1017
    %1433 = vmatprep.subr.mxu0 0.0
    %1434 = vmatpush1.msra.mxu0 %v1018
    %1435 = vmatprep.subr.mxu0 0.0
    %1436 = vmatpush1.msra.mxu0 %v1019
    %1437 = vmatprep.subr.mxu0 0.0
    %1438 = vmatpush1.msra.mxu0 0.0
    %1439 = vmatprep.subr.mxu0 0.0
    %1440 = vmatpush1.msra.mxu0 0.0
    %1441 = vmatprep.subr.mxu0 0.0
    %1442 = vmatpush1.msra.mxu0 0.0
    %1443 = vmatprep.subr.mxu0 0.0
    %1444 = vmatpush1.msra.mxu0 0.0
    %1445 = vmatprep.subr.mxu0 0.0
    %1446 = vmatpush1.msra.mxu0 0.0
    %1447 = vmatprep.subr.mxu0 0.0
    %1448 = vmatpush1.msra.mxu0 0.0
    %1449 = vmatprep.subr.mxu0 0.0
    %1450 = vmatpush1.msra.mxu0 0.0
    %1451 = vmatprep.subr.mxu0 0.0
    %1452 = vmatpush1.msra.mxu0 0.0
    %1453 = vmatprep.subr.mxu0 0.0
    %1454 = vmatpush1.msra.mxu0 0.0
    %1455 = vmatprep.subr.mxu0 0.0
    %1456 = vmatpush1.msra.mxu0 0.0
    %1457 = vmatprep.subr.mxu0 0.0
    %1458 = vmatpush1.msra.mxu0 0.0
    %1459 = vmatprep.subr.mxu0 0.0
    %1460 = vmatpush1.msra.mxu0 0.0
    %1461 = vmatprep.subr.mxu0 0.0
    %1462 = vmatpush1.msra.mxu0 0.0
    %1463 = vmatprep.subr.mxu0 0.0
    %1464 = vmatpush1.msra.mxu0 0.0
    %1465 = vmatprep.subr.mxu0 0.0
    %1466 = vmatpush1.msra.mxu0 0.0
    %1467 = vmatprep.subr.mxu0 0.0
    %1468 = vmatpush1.msra.mxu0 0.0
    %1469 = vmatprep.subr.mxu0 0.0
    %1470 = vmatpush1.msra.mxu0 0.0
    %1471 = vmatprep.subr.mxu0 0.0
    %1472 = vmatpush1.msra.mxu0 0.0
    %1473 = vmatprep.subr.mxu0 0.0
    %1474 = vmatpush1.msra.mxu0 0.0
    %1475 = vmatprep.subr.mxu0 0.0
    %1476 = vmatpush1.msra.mxu0 0.0
    %1477 = vmatprep.subr.mxu0 0.0
    %1478 = vmatpush1.msra.mxu0 0.0
    %1479 = vmatprep.subr.mxu0 0.0
    %1480 = vmatpush1.msra.mxu0 0.0
    %1481 = vmatprep.subr.mxu0 0.0
    %1482 = vmatpush1.msra.mxu0 0.0
    %1483 = vmatprep.subr.mxu0 0.0
    %1484 = vmatpush1.msra.mxu0 0.0
    %1485 = vmatprep.subr.mxu0 0.0
    %1486 = vmatpush1.msra.mxu0 0.0
    %1487 = vmatprep.subr.mxu0 0.0
    %1488 = vmatpush1.msra.mxu0 0.0
    %1489 = vmatprep.subr.mxu0 0.0
    %1490 = vmatpush1.msra.mxu0 0.0
    %1491 = vmatprep.subr.mxu0 0.0
    %1492 = vmatpush1.msra.mxu0 0.0
    %1493 = vmatprep.mubr.f32.mxu0 0.0
    %1494 = vmatmul.mubr.f32.gmra.mrb[0].mxu0 %v1425
    %v1495 = vpop.f32.mrb[0].mxu0
    %v1496 = vadd.f32 %v1382, %v1495
    %v1497 = vpop.f32.mrb[0].mxu0
    %1498 = vmatprep.mubr.f32.mxu0 0.0
    %1499 = vmatmul.mubr.f32.gmra.mrb[0].mxu0 %v1427
    %v1500 = vpop.f32.mrb[0].mxu0
    %v1501 = vadd.f32 %v1422, %v1500
    %v1502 = vpop.f32.mrb[0].mxu0
    %1503 = vdwg.mxu0
    %v1506 = vcombine.high %v1496, %v1496
    %v1508 = vunpack.c.l.s4 1966171168
    %v1509 = vunpack.c.0.s8 %v1508
    %v1510 = vlaneseq
    %v1511 = vshrl.u32 %v1510, 7
    %v1512 = vsub.s32 %v1509, %v1511
    %v1513 = vrot.slane %v1496, %v1512
    %v1515 = vunpack.c.l.s4 1966171168
    %v1516 = vunpack.c.0.s8 %v1515
    %v1517 = vlaneseq
    %v1518 = vshrl.u32 %v1517, 7
    %v1519 = vsub.s32 %v1516, %v1518
    %v1520 = vrot.slane %v1506, %v1519
    %v1521 = vcombine.high %v1513, %v1513
    %v1522 = vcombine.high %v1520, %v1520
    %v1524 = vunpack.c.l.s4 1966171168
    %v1525 = vunpack.c.0.s8 %v1524
    %v1526 = vlaneseq
    %v1527 = vshrl.u32 %v1526, 7
    %v1528 = vsub.s32 %v1525, %v1527
    %v1529 = vrot.slane %v1513, %v1528
    %v1531 = vunpack.c.l.s4 1966171168
    %v1532 = vunpack.c.0.s8 %v1531
    %v1533 = vlaneseq
    %v1534 = vshrl.u32 %v1533, 7
    %v1535 = vsub.s32 %v1532, %v1534
    %v1536 = vrot.slane %v1520, %v1535
    %v1538 = vunpack.c.l.s4 1966171168
    %v1539 = vunpack.c.0.s8 %v1538
    %v1540 = vlaneseq
    %v1541 = vshrl.u32 %v1540, 7
    %v1542 = vsub.s32 %v1539, %v1541
    %v1543 = vrot.slane %v1521, %v1542
    %v1545 = vunpack.c.l.s4 1966171168
    %v1546 = vunpack.c.0.s8 %v1545
    %v1547 = vlaneseq
    %v1548 = vshrl.u32 %v1547, 7
    %v1549 = vsub.s32 %v1546, %v1548
    %v1550 = vrot.slane %v1522, %v1549
    %v1551 = vcombine.high %v1529, %v1529
    %v1552 = vcombine.high %v1536, %v1536
    %v1553 = vcombine.high %v1543, %v1543
    %v1554 = vcombine.high %v1550, %v1550
    %v1555 = vcombine.high %v1501, %v1501
    %v1557 = vunpack.c.l.s4 1966171168
    %v1558 = vunpack.c.0.s8 %v1557
    %v1559 = vlaneseq
    %v1560 = vshrl.u32 %v1559, 7
    %v1561 = vsub.s32 %v1558, %v1560
    %v1562 = vrot.slane %v1501, %v1561
    %v1564 = vunpack.c.l.s4 1966171168
    %v1565 = vunpack.c.0.s8 %v1564
    %v1566 = vlaneseq
    %v1567 = vshrl.u32 %v1566, 7
    %v1568 = vsub.s32 %v1565, %v1567
    %v1569 = vrot.slane %v1555, %v1568
    %v1570 = vcombine.high %v1562, %v1562
    %v1571 = vcombine.high %v1569, %v1569
    %v1573 = vunpack.c.l.s4 1966171168
    %v1574 = vunpack.c.0.s8 %v1573
    %v1575 = vlaneseq
    %v1576 = vshrl.u32 %v1575, 7
    %v1577 = vsub.s32 %v1574, %v1576
    %v1578 = vrot.slane %v1562, %v1577
    %v1580 = vunpack.c.l.s4 1966171168
    %v1581 = vunpack.c.0.s8 %v1580
    %v1582 = vlaneseq
    %v1583 = vshrl.u32 %v1582, 7
    %v1584 = vsub.s32 %v1581, %v1583
    %v1585 = vrot.slane %v1569, %v1584
    %v1587 = vunpack.c.l.s4 1966171168
    %v1588 = vunpack.c.0.s8 %v1587
    %v1589 = vlaneseq
    %v1590 = vshrl.u32 %v1589, 7
    %v1591 = vsub.s32 %v1588, %v1590
    %v1592 = vrot.slane %v1570, %v1591
    %v1594 = vunpack.c.l.s4 1966171168
    %v1595 = vunpack.c.0.s8 %v1594
    %v1596 = vlaneseq
    %v1597 = vshrl.u32 %v1596, 7
    %v1598 = vsub.s32 %v1595, %v1597
    %v1599 = vrot.slane %v1571, %v1598
    %v1600 = vcombine.high %v1578, %v1578
    %v1601 = vcombine.high %v1592, %v1592
    %v1616 = vtanh.pop %v1529
    %v1617 = vtanh.pop %v1543
    %v1618 = vtanh.pop %v1551
    %v1619 = vtanh.pop %v1553
    %v1620 = vtanh.pop %v1536
    %v1621 = vtanh.pop %v1550
    %v1622 = vtanh.pop %v1552
    %v1623 = vtanh.pop %v1554
    %v1624 = vtanh.pop %v1578
    %v1625 = vtanh.pop %v1592
    %v1626 = vtanh.pop %v1600
    %v1627 = vtanh.pop %v1601
    %v1628 = vtanh.pop %v1585
    %v1629 = vtanh.pop %v1599
    %v1630 = vld [vmem:[%s21] sm:$0x1]
    %v1632 = vlaneseq
    %v1633 = vshrl.u32 %v1632, 7
    %v1634 = vsub.s32 0, %v1633
    %v1635 = vrot.slane %v1630, %v1634
    %v1636 = vcombine.high %v1635, %v1635
    %v1638 = vunpack.c.l.s4 1966171168
    %v1639 = vunpack.c.0.s8 %v1638
    %v1640 = vlaneseq
    %v1641 = vshrl.u32 %v1640, 7
    %v1642 = vsub.s32 %v1639, %v1641
    %v1643 = vrot.slane %v1635, %v1642
    %v1645 = vunpack.c.l.s4 1966171168
    %v1646 = vunpack.c.0.s8 %v1645
    %v1647 = vlaneseq
    %v1648 = vshrl.u32 %v1647, 7
    %v1649 = vsub.s32 %v1646, %v1648
    %v1650 = vrot.slane %v1636, %v1649
    %v1651 = vcombine.high %v1643, %v1643
    %v1652 = vcombine.high %v1650, %v1650
    %v1654 = vunpack.c.l.s4 1966171168
    %v1655 = vunpack.c.0.s8 %v1654
    %v1656 = vlaneseq
    %v1657 = vshrl.u32 %v1656, 7
    %v1658 = vsub.s32 %v1655, %v1657
    %v1659 = vrot.slane %v1643, %v1658
    %v1661 = vunpack.c.l.s4 1966171168
    %v1662 = vunpack.c.0.s8 %v1661
    %v1663 = vlaneseq
    %v1664 = vshrl.u32 %v1663, 7
    %v1665 = vsub.s32 %v1662, %v1664
    %v1666 = vrot.slane %v1650, %v1665
    %v1668 = vunpack.c.l.s4 1966171168
    %v1669 = vunpack.c.0.s8 %v1668
    %v1670 = vlaneseq
    %v1671 = vshrl.u32 %v1670, 7
    %v1672 = vsub.s32 %v1669, %v1671
    %v1673 = vrot.slane %v1651, %v1672
    %v1675 = vunpack.c.l.s4 1966171168
    %v1676 = vunpack.c.0.s8 %v1675
    %v1677 = vlaneseq
    %v1678 = vshrl.u32 %v1677, 7
    %v1679 = vsub.s32 %v1676, %v1678
    %v1680 = vrot.slane %v1652, %v1679
    %v1681 = vcombine.high %v1659, %v1659
    %v1682 = vcombine.high %v1666, %v1666
    %v1683 = vcombine.high %v1673, %v1673
    %v1691 = vmul.f32 %v1616, %v1659
    %v1692 = vmul.f32 %v1617, %v1673
    %v1693 = vmul.f32 %v1618, %v1681
    %v1694 = vmul.f32 %v1619, %v1683
    %v1695 = vmul.f32 %v1620, %v1666
    %v1696 = vmul.f32 %v1621, %v1680
    %v1697 = vmul.f32 %v1622, %v1682
    %v1698 = vmul.f32 %v1623, %v1659
    %v1699 = vmul.f32 %v1624, %v1673
    %v1700 = vmul.f32 %v1625, %v1681
    %v1701 = vmul.f32 %v1626, %v1683
    %v1702 = vmul.f32 %v1627, %v1666
    %v1703 = vmul.f32 %v1628, %v1680
    %v1704 = vmul.f32 %v1629, %v1682
    %v1719 = vcombine.low %v1691, %v1692
    %v1720 = vcombine.low %v1693, %v1694
    %v1721 = vcombine.low %v1695, %v1696
    %v1723 = vunpack.c.l.s4 1966171168
    %v1724 = vunpack.c.0.s8 %v1723
    %v1725 = vlaneseq
    %v1726 = vshrl.u32 %v1725, 7
    %v1727 = vsub.s32 %v1724, %v1726
    %v1728 = vrot.slane %v1719, %v1727
    %v1730 = vunpack.c.l.s4 1966171168
    %v1731 = vunpack.c.0.s8 %v1730
    %v1732 = vlaneseq
    %v1733 = vshrl.u32 %v1732, 7
    %v1734 = vsub.s32 %v1731, %v1733
    %v1735 = vrot.slane %v1720, %v1734
    %v1737 = vunpack.c.l.s4 1966171168
    %v1738 = vunpack.c.0.s8 %v1737
    %v1739 = vlaneseq
    %v1740 = vshrl.u32 %v1739, 7
    %v1741 = vsub.s32 %v1738, %v1740
    %v1742 = vrot.slane %v1721, %v1741
    %v1744 = vunpack.c.l.s4 1966171168
    %v1745 = vunpack.c.0.s8 %v1744
    %v1746 = vlaneseq
    %v1747 = vshrl.u32 %v1746, 7
    %v1748 = vsub.s32 %v1745, %v1747
    %v1749 = vrot.slane %v1697, %v1748
    %v1750 = vcombine.low %v1728, %v1735
    %v1751 = vcombine.low %v1742, %v1749
    %v1753 = vunpack.c.l.s4 1966171168
    %v1754 = vunpack.c.0.s8 %v1753
    %v1755 = vlaneseq
    %v1756 = vshrl.u32 %v1755, 7
    %v1757 = vsub.s32 %v1754, %v1756
    %v1758 = vrot.slane %v1750, %v1757
    %v1760 = vunpack.c.l.s4 1966171168
    %v1761 = vunpack.c.0.s8 %v1760
    %v1762 = vlaneseq
    %v1763 = vshrl.u32 %v1762, 7
    %v1764 = vsub.s32 %v1761, %v1763
    %v1765 = vrot.slane %v1751, %v1764
    %v1766 = vcombine.low %v1758, %v1765
    %v1767 = vcombine.low %v1698, %v1699
    %v1768 = vcombine.low %v1700, %v1701
    %v1769 = vcombine.low %v1702, %v1703
    %v1771 = vunpack.c.l.s4 1966171168
    %v1772 = vunpack.c.0.s8 %v1771
    %v1773 = vlaneseq
    %v1774 = vshrl.u32 %v1773, 7
    %v1775 = vsub.s32 %v1772, %v1774
    %v1776 = vrot.slane %v1767, %v1775
    %v1778 = vunpack.c.l.s4 1966171168
    %v1779 = vunpack.c.0.s8 %v1778
    %v1780 = vlaneseq
    %v1781 = vshrl.u32 %v1780, 7
    %v1782 = vsub.s32 %v1779, %v1781
    %v1783 = vrot.slane %v1768, %v1782
    %v1785 = vunpack.c.l.s4 1966171168
    %v1786 = vunpack.c.0.s8 %v1785
    %v1787 = vlaneseq
    %v1788 = vshrl.u32 %v1787, 7
    %v1789 = vsub.s32 %v1786, %v1788
    %v1790 = vrot.slane %v1769, %v1789
    %v1792 = vunpack.c.l.s4 1966171168
    %v1793 = vunpack.c.0.s8 %v1792
    %v1794 = vlaneseq
    %v1795 = vshrl.u32 %v1794, 7
    %v1796 = vsub.s32 %v1793, %v1795
    %v1797 = vrot.slane %v1704, %v1796
    %v1798 = vcombine.low %v1776, %v1783
    %v1799 = vcombine.low %v1790, %v1797
    %v1801 = vunpack.c.l.s4 1966171168
    %v1802 = vunpack.c.0.s8 %v1801
    %v1803 = vlaneseq
    %v1804 = vshrl.u32 %v1803, 7
    %v1805 = vsub.s32 %v1802, %v1804
    %v1806 = vrot.slane %v1798, %v1805
    %v1808 = vunpack.c.l.s4 1966171168
    %v1809 = vunpack.c.0.s8 %v1808
    %v1810 = vlaneseq
    %v1811 = vshrl.u32 %v1810, 7
    %v1812 = vsub.s32 %v1809, %v1811
    %v1813 = vrot.slane %v1799, %v1812
    %v1814 = vcombine.low %v1806, %v1813
    %vm1817 = vcmask 260096
    %v1818 = vsel %vm1817, %v1766, 0.0
    %1819 = vadd.xlane.f32.xlu0 %v1818
    %v1820 = vpop.xlane.xlu0 %1819
    %v1821 = vsel %vm1817, %v1814, 0.0
    %1822 = vadd.xlane.f32.xlu0 %v1821
    %v1823 = vpop.xlane.xlu0 %1822
    %v1824 = vld [vmem:[%s6] sm:$0x3]
    %vm1825 = vcmp.ne.s32.totalorder %v1824, 0
    %v1828 = vlaneseq
    %v1829 = vand.u32 %v1828, 127
    %v1830 = vlaneseq
    %v1831 = vshrl.u32 %v1830, 7
    %v1832 = vsub.s32 %v1829, %v1831
    %v1833 = vrot.slane %v1820, %v1832
    %v1834 = vlaneseq
    %v1835 = vshrl.u32 %v1834, 7
    %v1836 = vsub.s32 %v1829, %v1835
    %v1837 = vrot.slane %v1823, %v1836
    %vm1838 = vcmask 1041409
    %v1839 = vsel %vm1838, %v1837, %v1833
    %v1841 = vsel %vm1825, -1e+12, %v1839
    %vm1842 = vcmask 50176
    %1843 = vst.msk [vmem:[#allocation3] sm:$0x3] %vm1842, %v1841
    %v1844 = vld [vmem:[%s22] sm:$0xff]
    %v1845 = vld [vmem:[%s22 + $0x8] sm:$0xff]
    %v1846 = vld [vmem:[%s22 + $0x10] sm:$0xff]
    %v1847 = vld [vmem:[%s22 + $0x18] sm:$0xff]
    %v1848 = vld [vmem:[%s23] sm:$0xff]
    %v1849 = vld [vmem:[%s23 + $0x8] sm:$0xff]
    %v1850 = vld [vmem:[%s23 + $0x10] sm:$0xff]
    %v1851 = vld [vmem:[%s23 + $0x18] sm:$0xff]
    %1852 = vmatprep.subr.mxu0 0.0
    %1853 = vmatpush1.msra.mxu0 %v1848
    %1854 = vmatprep.subr.mxu0 0.0
    %1855 = vmatpush1.msra.mxu0 %v1849
    %1856 = vmatprep.subr.mxu0 0.0
    %1857 = vmatpush1.msra.mxu0 %v1850
    %1858 = vmatprep.subr.mxu0 0.0
    %1859 = vmatpush1.msra.mxu0 %v1851
    %1860 = vmatprep.subr.mxu0 0.0
    %1861 = vmatpush1.msra.mxu0 0.0
    %1862 = vmatprep.subr.mxu0 0.0
    %1863 = vmatpush1.msra.mxu0 0.0
    %1864 = vmatprep.subr.mxu0 0.0
    %1865 = vmatpush1.msra.mxu0 0.0
    %1866 = vmatprep.subr.mxu0 0.0
    %1867 = vmatpush1.msra.mxu0 0.0
    %1868 = vmatprep.subr.mxu0 0.0
    %1869 = vmatpush1.msra.mxu0 0.0
    %1870 = vmatprep.subr.mxu0 0.0
    %1871 = vmatpush1.msra.mxu0 0.0
    %1872 = vmatprep.subr.mxu0 0.0
    %1873 = vmatpush1.msra.mxu0 0.0
    %1874 = vmatprep.subr.mxu0 0.0
    %1875 = vmatpush1.msra.mxu0 0.0
    %1876 = vmatprep.subr.mxu0 0.0
    %1877 = vmatpush1.msra.mxu0 0.0
    %1878 = vmatprep.subr.mxu0 0.0
    %1879 = vmatpush1.msra.mxu0 0.0
    %1880 = vmatprep.subr.mxu0 0.0
    %1881 = vmatpush1.msra.mxu0 0.0
    %1882 = vmatprep.subr.mxu0 0.0
    %1883 = vmatpush1.msra.mxu0 0.0
    %1884 = vmatprep.subr.mxu0 0.0
    %1885 = vmatpush1.msra.mxu0 0.0
    %1886 = vmatprep.subr.mxu0 0.0
    %1887 = vmatpush1.msra.mxu0 0.0
    %1888 = vmatprep.subr.mxu0 0.0
    %1889 = vmatpush1.msra.mxu0 0.0
    %1890 = vmatprep.subr.mxu0 0.0
    %1891 = vmatpush1.msra.mxu0 0.0
    %1892 = vmatprep.subr.mxu0 0.0
    %1893 = vmatpush1.msra.mxu0 0.0
    %1894 = vmatprep.subr.mxu0 0.0
    %1895 = vmatpush1.msra.mxu0 0.0
    %1896 = vmatprep.subr.mxu0 0.0
    %1897 = vmatpush1.msra.mxu0 0.0
    %1898 = vmatprep.subr.mxu0 0.0
    %1899 = vmatpush1.msra.mxu0 0.0
    %1900 = vmatprep.subr.mxu0 0.0
    %1901 = vmatpush1.msra.mxu0 0.0
    %1902 = vmatprep.subr.mxu0 0.0
    %1903 = vmatpush1.msra.mxu0 0.0
    %1904 = vmatprep.subr.mxu0 0.0
    %1905 = vmatpush1.msra.mxu0 0.0
    %1906 = vmatprep.subr.mxu0 0.0
    %1907 = vmatpush1.msra.mxu0 0.0
    %1908 = vmatprep.subr.mxu0 0.0
    %1909 = vmatpush1.msra.mxu0 0.0
    %1910 = vmatprep.subr.mxu0 0.0
    %1911 = vmatpush1.msra.mxu0 0.0
    %1912 = vmatprep.subr.mxu0 0.0
    %1913 = vmatpush1.msra.mxu0 0.0
    %1914 = vmatprep.subr.mxu0 0.0
    %1915 = vmatpush1.msra.mxu0 0.0
    %1916 = vmatprep.mubr.f32.mxu0 0.0
    %1917 = vmatmul.mubr.f32.gmra.mrb[0].mxu0 %v866
    %v1918 = vpop.f32.mrb[0].mxu0
    %v1919 = vadd.f32 0.0, %v1918
    %v1920 = vpop.f32.mrb[0].mxu0
    %1921 = vdwg.mxu0
    %1922 = vmatprep.subr.mxu0 0.0
    %1923 = vmatpush1.msra.mxu0 %v1844
    %1924 = vmatprep.subr.mxu0 0.0
    %1925 = vmatpush1.msra.mxu0 %v1845
    %1926 = vmatprep.subr.mxu0 0.0
    %1927 = vmatpush1.msra.mxu0 %v1846
    %1928 = vmatprep.subr.mxu0 0.0
    %1929 = vmatpush1.msra.mxu0 %v1847
    %1930 = vmatprep.subr.mxu0 0.0
    %1931 = vmatpush1.msra.mxu0 0.0
    %1932 = vmatprep.subr.mxu0 0.0
    %1933 = vmatpush1.msra.mxu0 0.0
    %1934 = vmatprep.subr.mxu0 0.0
    %1935 = vmatpush1.msra.mxu0 0.0
    %1936 = vmatprep.subr.mxu0 0.0
    %1937 = vmatpush1.msra.mxu0 0.0
    %1938 = vmatprep.subr.mxu0 0.0
    %1939 = vmatpush1.msra.mxu0 0.0
    %1940 = vmatprep.subr.mxu0 0.0
    %1941 = vmatpush1.msra.mxu0 0.0
    %1942 = vmatprep.subr.mxu0 0.0
    %1943 = vmatpush1.msra.mxu0 0.0
    %1944 = vmatprep.subr.mxu0 0.0
    %1945 = vmatpush1.msra.mxu0 0.0
    %1946 = vmatprep.subr.mxu0 0.0
    %1947 = vmatpush1.msra.mxu0 0.0
    %1948 = vmatprep.subr.mxu0 0.0
    %1949 = vmatpush1.msra.mxu0 0.0
    %1950 = vmatprep.subr.mxu0 0.0
    %1951 = vmatpush1.msra.mxu0 0.0
    %1952 = vmatprep.subr.mxu0 0.0
    %1953 = vmatpush1.msra.mxu0 0.0
    %1954 = vmatprep.subr.mxu0 0.0
    %1955 = vmatpush1.msra.mxu0 0.0
    %1956 = vmatprep.subr.mxu0 0.0
    %1957 = vmatpush1.msra.mxu0 0.0
    %1958 = vmatprep.subr.mxu0 0.0
    %1959 = vmatpush1.msra.mxu0 0.0
    %1960 = vmatprep.subr.mxu0 0.0
    %1961 = vmatpush1.msra.mxu0 0.0
    %1962 = vmatprep.subr.mxu0 0.0
    %1963 = vmatpush1.msra.mxu0 0.0
    %1964 = vmatprep.subr.mxu0 0.0
    %1965 = vmatpush1.msra.mxu0 0.0
    %1966 = vmatprep.subr.mxu0 0.0
    %1967 = vmatpush1.msra.mxu0 0.0
    %1968 = vmatprep.subr.mxu0 0.0
    %1969 = vmatpush1.msra.mxu0 0.0
    %1970 = vmatprep.subr.mxu0 0.0
    %1971 = vmatpush1.msra.mxu0 0.0
    %1972 = vmatprep.subr.mxu0 0.0
    %1973 = vmatpush1.msra.mxu0 0.0
    %1974 = vmatprep.subr.mxu0 0.0
    %1975 = vmatpush1.msra.mxu0 0.0
    %1976 = vmatprep.subr.mxu0 0.0
    %1977 = vmatpush1.msra.mxu0 0.0
    %1978 = vmatprep.subr.mxu0 0.0
    %1979 = vmatpush1.msra.mxu0 0.0
    %1980 = vmatprep.subr.mxu0 0.0
    %1981 = vmatpush1.msra.mxu0 0.0
    %1982 = vmatprep.subr.mxu0 0.0
    %1983 = vmatpush1.msra.mxu0 0.0
    %1984 = vmatprep.subr.mxu0 0.0
    %1985 = vmatpush1.msra.mxu0 0.0
    %1986 = vmatprep.mubr.f32.mxu0 0.0
    %1987 = vmatmul.mubr.f32.gmra.mrb[0].mxu0 %v389
    %v1988 = vpop.f32.mrb[0].mxu0
    %v1989 = vadd.f32 %v1919, %v1988
    %v1990 = vpop.f32.mrb[0].mxu0
    %1991 = vdwg.mxu0
    %v1992 = vld [vmem:[%s24] sm:$0x1]
    %v1994 = vlaneseq
    %v1995 = vshrl.u32 %v1994, 7
    %v1996 = vsub.s32 0, %v1995
    %v1997 = vrot.slane %v1992, %v1996
    %v1999 = vadd.f32 %v1989, %v1997
    %vm2000 = vcmask 41984
    %2001 = vst.msk [vmem:[#allocation5] sm:$0x3] %vm2000, %v1999
    // Predicated region
    $region102: #{prediction_forward.1} parent=1 // pred_check
      _
    $region103: #{prediction_forward.1} parent=1 // pred_check_branch
      %2003 = sbr.rel (0) target = $region105
    $region104: #{prediction_forward.1} parent=1 // pred_region
      %s2005 = ssub.s32 32, 32
      %2006 = vsyncadd [#allocation4], %s2005
      %s2008 = sshll.u32 [#allocation3], 4
      %s2009 = int_to_ptr.vmem [resolvable:$true] %s2008
      %2011 = dma.vmem_to_hbm [thread:$0]  %s2009, 32, %s25, [#allocation4]
    $region105: #{prediction_forward.1} parent=1 // pred_fallthru
      _
    // Predicated region
    $region106: #{prediction_forward.1} parent=1 // pred_check
      _
    $region107: #{prediction_forward.1} parent=1 // pred_check_branch
      %2013 = sbr.rel (0) target = $region109
    $region108: #{prediction_forward.1} parent=1 // pred_region
      %s2015 = ssub.s32 32, 32
      %2016 = vsyncadd [#allocation6], %s2015
      %s2018 = sshll.u32 [#allocation5], 4
      %s2019 = int_to_ptr.vmem [resolvable:$true] %s2018
      %2021 = dma.vmem_to_hbm [thread:$0]  %s2019, 32, %s26, [#allocation6]
    $region109: #{prediction_forward.1} parent=1 // pred_fallthru
      _
    // Predicated region
    $region110: #{prediction_forward.1} parent=1 // pred_check
      _
    $region111: #{prediction_forward.1} parent=1 // pred_check_branch
      %2023 = sbr.rel (0) target = $region113
    $region112: #{prediction_forward.1} parent=1 // pred_region
      %s2025 = ssub.s32 32, 32
      %2026 = vsyncadd [#allocation6], %s2025
      %s2028 = sshll.u32 [#allocation7], 4
      %s2029 = int_to_ptr.vmem [resolvable:$true] %s2028
      %2031 = dma.vmem_to_hbm [thread:$0]  %s2029, 32, %s27, [#allocation6]
    $region113: #{prediction_forward.1} parent=1 // pred_fallthru
      _
    // Predicated region
    $region114: #{prediction_forward.1} parent=1 // pred_check
      _
    $region115: #{prediction_forward.1} parent=1 // pred_check_branch
      %2033 = sbr.rel (0) target = $region117
    $region116: #{prediction_forward.1} parent=1 // pred_region
      %s2035 = ssub.s32 32, 32
      %2036 = vsyncadd [#allocation9], %s2035
      %s2038 = sshll.u32 [#allocation8], 4
      %s2039 = int_to_ptr.vmem [resolvable:$true] %s2038
      %2041 = dma.vmem_to_hbm [thread:$0]  %s2039, 32, %s28, [#allocation9]
    $region117: #{prediction_forward.1} parent=1 // pred_fallthru
      _
    // Predicated region
    $region118: #{prediction_forward.1} parent=1 // pred_check
      _
    $region119: #{prediction_forward.1} parent=1 // pred_check_branch
      %2043 = sbr.rel (0) target = $region121
    $region120: #{prediction_forward.1} parent=1 // pred_region
      %2044 = dma.done [#allocation4], 32
    $region121: #{prediction_forward.1} parent=1 // pred_fallthru
      _
    // Predicated region
    $region122: #{prediction_forward.1} parent=1 // pred_check
      _
    $region123: #{prediction_forward.1} parent=1 // pred_check_branch
      %2046 = sbr.rel (0) target = $region125
    $region124: #{prediction_forward.1} parent=1 // pred_region
      %2047 = dma.done [#allocation6], 32
    $region125: #{prediction_forward.1} parent=1 // pred_fallthru
      _
    // Predicated region
    $region126: #{prediction_forward.1} parent=1 // pred_check
      _
    $region127: #{prediction_forward.1} parent=1 // pred_check_branch
      %2049 = sbr.rel (0) target = $region129
    $region128: #{prediction_forward.1} parent=1 // pred_region
      %2050 = dma.done [#allocation6], 32
    $region129: #{prediction_forward.1} parent=1 // pred_fallthru
      _
    // Predicated region
    $region130: #{prediction_forward.1} parent=1 // pred_check
      _
    $region131: #{prediction_forward.1} parent=1 // pred_check_branch
      %2052 = sbr.rel (0) target = $region133
    $region132: #{prediction_forward.1} parent=1 // pred_region
      %2053 = dma.done [#allocation9], 32
    $region133: #{prediction_forward.1} parent=1 // pred_fallthru
      _
    %2054 = vsyncpa [#allocation4], 1
    %2055 = vsyncpa [#allocation6], 1
    %2056 = vsyncpa [#allocation9], 1

</llo_original>
